<compile_context>
chip_gen: v6e
topology: v6e:2x2x1
jax: 0.10.0
libtpu: 0.0.40
codegen_flags: <defaults>
</compile_context>

<pallas_src>
import jax
import jax.numpy as jnp
import numpy as np
from jax import lax
from jax.experimental import pallas as pl
from jax.experimental.pallas import tpu as pltpu


# ---------------------------------------------------------------------------
# Pallas kernel.  Grid = (batch, HW tile); one (C, TILE_HW) feats slab per step.
# ---------------------------------------------------------------------------
def _spatial_ocr_kernel(x_ref, p_ref,
                        wp1, bp1, wp2, bp2,          # f_pixel   (query path)
                        wo1, bo1, wo2, bo2,          # f_object  (key path)
                        wd, bd,                      # f_down    (value path)
                        wu, bu,                      # f_up
                        wcc, wcf, bcat,              # conv_bn_dropout (split)
                        out_ref,
                        k_scr, v_scr):
    f32 = jnp.float32
    bf16 = jnp.bfloat16
    STD = (((1,), (0,)), ((), ()))   # (O, I) x (I, T) -> (O, T)
    TRB = (((1,), (1,)), ((), ()))   # contract last dims (trans_b, no relayout)

    def mm(a, b):
        return lax.dot_general(a, b, STD, preferred_element_type=f32)

    def mm_tb(a, b):
        return lax.dot_general(a, b, TRB, preferred_element_type=f32)

    x = x_ref[0]                                                    # (C, T) bf16

    # ---- proxy-side key / value: computed once per batch element, cached ----
    @pl.when(pl.program_id(1) == 0)
    def _():
        p = p_ref[0]                                                # (M, C) bf16
        k1 = jnp.maximum(mm_tb(p, wo1[...]) + bo1[...], 0.0)        # (M, Kc)
        k2 = jnp.maximum(mm_tb(k1.astype(bf16), wo2[...]) + bo2[...], 0.0)
        k_scr[...] = k2                                             # (M, Kc) f32
        v_scr[...] = jnp.maximum(mm_tb(wd[...], p) + bd[...], 0.0)  # (Kc, M) f32

    # ---- pixel-side query (kc**-0.5 already folded into wp2 / bp2) ----
    q1 = jnp.maximum(mm(wp1[...], x) + bp1[...], 0.0)               # (Kc, T)
    q = jnp.maximum(mm(wp2[...], q1.astype(bf16)) + bp2[...], 0.0)  # (Kc, T)

    # ---- attention: softmax over the M object regions (sublane axis) ----
    sim = mm(k_scr[...].astype(bf16), q.astype(bf16))               # (M, T) f32
    sim = sim - jnp.max(sim, axis=0, keepdims=True)
    e = jnp.exp(sim)
    denom = jnp.sum(e, axis=0, keepdims=True)                       # (1, T)
    attn = e * pl.reciprocal(denom, approx=True)                    # (M, T)

    ctx = mm(v_scr[...].astype(bf16), attn.astype(bf16))            # (Kc, T)
    ctx = jnp.maximum(mm(wu[...], ctx.astype(bf16)) + bu[...], 0.0) # (C, T)

    # ---- conv_bn_dropout(cat([context, feats], 1)) == split-weight matmul ----
    y = mm(wcc[...], ctx.astype(bf16)) + mm(wcf[...], x) + bcat[...]
    out_ref[0] = jnp.maximum(y, 0.0).astype(out_ref.dtype)          # (out_c, T)


# ---------------------------------------------------------------------------
# Wrapper: NCHW in -> (N, C, HW) channel-leading (no big transpose) -> NCHW out.
# ---------------------------------------------------------------------------
def spatial_ocr_forward(feats_nchw, proxy_nchw, params, *, tile_hw=None):
    N, C, H, W = feats_nchw.shape
    Np, Cp, Hp, Wp = proxy_nchw.shape
    assert Np == N and Cp == C
    HW = H * W
    M = Hp * Wp
    kc = params["wp2"].shape[0]
    out_c = params["bcat"].shape[0]

    if tile_hw is None:
        tile_hw = min(512, HW)
    # TODO(synk): ragged HW (not a multiple of 128 / tile_hw) would need a
    # padded final tile with a masked store; OCRNet head sizes are multiples.
    assert tile_hw % 128 == 0 and HW % tile_hw == 0
    n_hw_tiles = HW // tile_hw

    compute_dtype = params["wp1"].dtype     # bf16

    # Channel-leading: reshape only (free), no HBM transpose of feats.
    x = feats_nchw.reshape(N, C, HW).astype(compute_dtype)
    # Proxy is tiny (M object regions); this transpose is negligible.
    p = jnp.transpose(proxy_nchw.reshape(N, C, M), (0, 2, 1)).astype(compute_dtype)

    weight_order = ["wp1", "bp1", "wp2", "bp2",
                    "wo1", "bo1", "wo2", "bo2",
                    "wd", "bd", "wu", "bu",
                    "wcc", "wcf", "bcat"]
    weights = [params[n] for n in weight_order]

    def const_spec(arr):
        nd = arr.ndim
        return pl.BlockSpec(arr.shape, lambda b, t, _nd=nd: (0,) * _nd)

    in_specs = ([pl.BlockSpec((1, C, tile_hw), lambda b, t: (b, 0, t)),
                 pl.BlockSpec((1, M, C), lambda b, t: (b, 0, 0))]
                + [const_spec(w) for w in weights])

    out = pl.pallas_call(
        _spatial_ocr_kernel,
        out_shape=jax.ShapeDtypeStruct((N, out_c, HW), jnp.float32),
        grid_spec=pltpu.PrefetchScalarGridSpec(
            num_scalar_prefetch=0,
            grid=(N, n_hw_tiles),
            in_specs=in_specs,
            out_specs=pl.BlockSpec((1, out_c, tile_hw), lambda b, t: (b, 0, t)),
            scratch_shapes=[pltpu.VMEM((M, kc), jnp.float32),    # key   (M, Kc)
                            pltpu.VMEM((kc, M), jnp.float32)],   # value (Kc, M)
        ),
        compiler_params=pltpu.CompilerParams(
            # Batch axis parallel (megacore sharding); HW axis must stay
            # "arbitrary" so the k/v scratch written at hw_tile==0 remains
            # valid for the following tiles of the same batch element.
            dimension_semantics=("parallel", "arbitrary"),
            vmem_limit_bytes=48 * 1024 * 1024,   # fits v7x's 64 MiB VMEM
        ),
    )(x, p, *weights)

    return out.reshape(N, out_c, H, W)


# ---------------------------------------------------------------------------
# Raw (PyTorch-like) parameters: conv weights in (out, in) layout + BN stats.
# ---------------------------------------------------------------------------
def make_raw_params(key, c_in, kc, c_out):
    keys = iter(jax.random.split(key, 16))

    def conv(out_f, in_f):
        return (jax.random.normal(next(keys), (out_f, in_f), jnp.float32)
                / np.sqrt(float(in_f)))

    def bn(n):
        k1, k2, k3, k4 = jax.random.split(next(keys), 4)
        gamma = 1.0 + 0.1 * jax.random.normal(k1, (n,), jnp.float32)
        beta = 0.1 * jax.random.normal(k2, (n,), jnp.float32)
        mean = 0.1 * jax.random.normal(k3, (n,), jnp.float32)
        var = 0.5 + jax.random.uniform(k4, (n,), jnp.float32)
        return gamma, beta, mean, var

    return {
        "p1_w": conv(kc, c_in), "p1_bn": bn(kc),     # f_pixel
        "p2_w": conv(kc, kc),   "p2_bn": bn(kc),
        "o1_w": conv(kc, c_in), "o1_bn": bn(kc),     # f_object
        "o2_w": conv(kc, kc),   "o2_bn": bn(kc),
        "d_w":  conv(kc, c_in), "d_bn":  bn(kc),     # f_down
        "u_w":  conv(c_in, kc), "u_bn":  bn(c_in),   # f_up
        "c_w":  conv(c_out, 2 * c_in), "c_bn": bn(c_out),   # conv_bn_dropout
    }


# ---------------------------------------------------------------------------
# Host-side folding: BN scale -> weights (bf16), bias stays f32; fold the
# kc**-0.5 attention scale into the second f_pixel layer (valid: scale > 0
# commutes through ReLU).
# ---------------------------------------------------------------------------
def fold_params(raw, key_channels, eps=1e-5, compute_dtype=jnp.bfloat16):
    def fold(w, bn, extra=1.0):
        gamma, beta, mean, var = bn
        s = gamma * lax.rsqrt(var + eps)
        wf = (w * s[:, None] * extra).astype(compute_dtype)
        b = ((beta - mean * s) * extra).astype(jnp.float32)
        return wf, b

    c_in = raw["p1_w"].shape[1]
    attn_scale = float(key_channels) ** -0.5
    p = {}
    w, b = fold(raw["p1_w"], raw["p1_bn"]);              p["wp1"], p["bp1"] = w, b[:, None]
    w, b = fold(raw["p2_w"], raw["p2_bn"], attn_scale);  p["wp2"], p["bp2"] = w, b[:, None]
    w, b = fold(raw["o1_w"], raw["o1_bn"]);              p["wo1"], p["bo1"] = w, b[None, :]
    w, b = fold(raw["o2_w"], raw["o2_bn"]);              p["wo2"], p["bo2"] = w, b[None, :]
    w, b = fold(raw["d_w"], raw["d_bn"]);                p["wd"],  p["bd"] = w, b[:, None]
    w, b = fold(raw["u_w"], raw["u_bn"]);                p["wu"],  p["bu"] = w, b[:, None]
    w, b = fold(raw["c_w"], raw["c_bn"])
    p["wcc"], p["wcf"], p["bcat"] = w[:, :c_in], w[:, c_in:], b[:, None]
    return p


# ---------------------------------------------------------------------------
# Pure-JAX f32 reference, faithful to the PyTorch module (inference BN).
# ---------------------------------------------------------------------------
def reference_forward(feats_nchw, proxy_nchw, raw, eps=1e-5):
    N, C, H, W = feats_nchw.shape
    x = feats_nchw.reshape(N, C, H * W)
    p = proxy_nchw.reshape(N, C, -1)

    def cbr(a, w, bn):   # a: (N, Cin, L), w: (Cout, Cin)
        gamma, beta, mean, var = bn
        y = jnp.einsum("oc,ncl->nol", w, a)
        s = gamma * lax.rsqrt(var + eps)
        y = y * s[None, :, None] + (beta - mean * s)[None, :, None]
        return jnp.maximum(y, 0.0)

    q = cbr(cbr(x, raw["p1_w"], raw["p1_bn"]), raw["p2_w"], raw["p2_bn"])   # (N,Kc,HW)
    k = cbr(cbr(p, raw["o1_w"], raw["o1_bn"]), raw["o2_w"], raw["o2_bn"])   # (N,Kc,M)
    v = cbr(p, raw["d_w"], raw["d_bn"])                                     # (N,Kc,M)
    kc = q.shape[1]
    sim = jnp.einsum("nkq,nkm->nqm", q, k) * (kc ** -0.5)                   # (N,HW,M)
    attn = jax.nn.softmax(sim, axis=-1)
    ctx = jnp.einsum("nqm,nkm->nkq", attn, v)                               # (N,Kc,HW)
    ctx = cbr(ctx, raw["u_w"], raw["u_bn"])                                 # (N,C,HW)
    y = cbr(jnp.concatenate([ctx, x], axis=1), raw["c_w"], raw["c_bn"])     # (N,out,HW)
    return y.reshape(N, -1, H, W)


if __name__ == "__main__":
    N, C_IN, KEY_C, OUT_C = 2, 32, 16, 32
    H = W = 16                      # pixel feature map 16x16 -> HW = 256
    HP, WP = 8, 1                   # 8 object-region proxy features

    root = jax.random.PRNGKey(0)
    k_feat, k_proxy, k_param = jax.random.split(root, 3)
    feats = jax.random.normal(k_feat, (N, C_IN, H, W), jnp.float32)
    proxy = jax.random.normal(k_proxy, (N, C_IN, HP, WP), jnp.float32)

    raw = make_raw_params(k_param, C_IN, KEY_C, OUT_C)
    params = fold_params(raw, KEY_C)

    # tile_hw=128 -> two spatial tiles per batch element, exercising the
    # hoisted key/value scratch path (production would use 512).
    out = spatial_ocr_forward(feats, proxy, params, tile_hw=128)
    out = jax.block_until_ready(out)

    ref = jax.block_until_ready(reference_forward(feats, proxy, raw))
    # Loose-ish tolerance: kernel uses bf16 matmul operands + approx reciprocal
    # against an all-f32 reference.
    np.testing.assert_allclose(np.asarray(out), np.asarray(ref),
                               rtol=5e-2, atol=5e-2)

    print("KERNEL_OK")
</pallas_src>

<mosaic_0001>
module attributes {stable_mosaic.version = 11 : i64} {
  func.func @_spatial_ocr_kernel(%arg0: i32, %arg1: i32, %arg2: memref<1x32x128xbf16, #tpu.memory_space<vmem>>, %arg3: memref<1x8x32xbf16, #tpu.memory_space<vmem>>, %arg4: memref<16x32xbf16, #tpu.memory_space<vmem>>, %arg5: memref<16x1xf32, #tpu.memory_space<vmem>>, %arg6: memref<16x16xbf16, #tpu.memory_space<vmem>>, %arg7: memref<16x1xf32, #tpu.memory_space<vmem>>, %arg8: memref<16x32xbf16, #tpu.memory_space<vmem>>, %arg9: memref<1x16xf32, #tpu.memory_space<vmem>>, %arg10: memref<16x16xbf16, #tpu.memory_space<vmem>>, %arg11: memref<1x16xf32, #tpu.memory_space<vmem>>, %arg12: memref<16x32xbf16, #tpu.memory_space<vmem>>, %arg13: memref<16x1xf32, #tpu.memory_space<vmem>>, %arg14: memref<32x16xbf16, #tpu.memory_space<vmem>>, %arg15: memref<32x1xf32, #tpu.memory_space<vmem>>, %arg16: memref<32x32xbf16, #tpu.memory_space<vmem>>, %arg17: memref<32x32xbf16, #tpu.memory_space<vmem>>, %arg18: memref<32x1xf32, #tpu.memory_space<vmem>>, %arg19: memref<1x32x128xf32, #tpu.memory_space<vmem>>, %arg20: memref<8x16xf32, #tpu.memory_space<vmem>>, %arg21: memref<16x8xf32, #tpu.memory_space<vmem>>) attributes {dimension_semantics = [#tpu.dimension_semantics<parallel>, #tpu.dimension_semantics<arbitrary>], iteration_bounds = array<i64: 2, 2>, scalar_prefetch = 0 : i64, scratch_operands = 2 : i64, tpu.core_type = #tpu.core_type<tc>, window_params = [{transform_indices = @transform_0, window_bounds = array<i64: 1, 32, 128>}, {transform_indices = @transform_1, window_bounds = array<i64: 1, 8, 32>}, {pipeline_mode = #tpu.pipeline_mode<synchronous>, transform_indices = @transform_2, window_bounds = array<i64: 16, 32>}, {pipeline_mode = #tpu.pipeline_mode<synchronous>, transform_indices = @transform_3, window_bounds = array<i64: 16, 1>}, {pipeline_mode = #tpu.pipeline_mode<synchronous>, transform_indices = @transform_4, window_bounds = array<i64: 16, 16>}, {pipeline_mode = #tpu.pipeline_mode<synchronous>, transform_indices = @transform_5, window_bounds = array<i64: 16, 1>}, {pipeline_mode = #tpu.pipeline_mode<synchronous>, transform_indices = @transform_6, window_bounds = array<i64: 16, 32>}, {pipeline_mode = #tpu.pipeline_mode<synchronous>, transform_indices = @transform_7, window_bounds = array<i64: 1, 16>}, {pipeline_mode = #tpu.pipeline_mode<synchronous>, transform_indices = @transform_8, window_bounds = array<i64: 16, 16>}, {pipeline_mode = #tpu.pipeline_mode<synchronous>, transform_indices = @transform_9, window_bounds = array<i64: 1, 16>}, {pipeline_mode = #tpu.pipeline_mode<synchronous>, transform_indices = @transform_10, window_bounds = array<i64: 16, 32>}, {pipeline_mode = #tpu.pipeline_mode<synchronous>, transform_indices = @transform_11, window_bounds = array<i64: 16, 1>}, {pipeline_mode = #tpu.pipeline_mode<synchronous>, transform_indices = @transform_12, window_bounds = array<i64: 32, 16>}, {pipeline_mode = #tpu.pipeline_mode<synchronous>, transform_indices = @transform_13, window_bounds = array<i64: 32, 1>}, {pipeline_mode = #tpu.pipeline_mode<synchronous>, transform_indices = @transform_14, window_bounds = array<i64: 32, 32>}, {pipeline_mode = #tpu.pipeline_mode<synchronous>, transform_indices = @transform_15, window_bounds = array<i64: 32, 32>}, {pipeline_mode = #tpu.pipeline_mode<synchronous>, transform_indices = @transform_16, window_bounds = array<i64: 32, 1>}, {transform_indices = @transform_17, window_bounds = array<i64: 1, 32, 128>}]} {
    %c0 = arith.constant 0 : index
    %c0_0 = arith.constant 0 : index
    %c0_1 = arith.constant 0 : index
    %0 = vector.load %arg2[%c0, %c0_0, %c0_1] : memref<1x32x128xbf16, #tpu.memory_space<vmem>>, vector<1x32x128xbf16>
    %1 = vector.shape_cast %0 : vector<1x32x128xbf16> to vector<32x128xbf16>
    %c0_i32 = arith.constant 0 : i32
    %2 = arith.cmpi eq, %arg1, %c0_i32 : i32
    %3 = arith.extui %2 : i1 to i32
    %c0_i32_2 = arith.constant 0 : i32
    %4 = arith.cmpi ne, %3, %c0_i32_2 : i32
    scf.if %4 {
      %c0_40 = arith.constant 0 : index
      %c0_41 = arith.constant 0 : index
      %c0_42 = arith.constant 0 : index
      %60 = vector.load %arg3[%c0_40, %c0_41, %c0_42] : memref<1x8x32xbf16, #tpu.memory_space<vmem>>, vector<1x8x32xbf16>
      %61 = vector.shape_cast %60 : vector<1x8x32xbf16> to vector<8x32xbf16>
      %c0_43 = arith.constant 0 : index
      %c0_44 = arith.constant 0 : index
      %62 = vector.load %arg8[%c0_43, %c0_44] : memref<16x32xbf16, #tpu.memory_space<vmem>>, vector<16x32xbf16>
      %cst_45 = arith.constant dense<0.000000e+00> : vector<8x16xf32>
      %63 = tpu.matmul %61, %62, %cst_45 {dimension_numbers = #tpu.dot_dimension_numbers<[1], [1], [0], [0], [0, 0, 1, 0], [], []>} : vector<8x32xbf16>, vector<16x32xbf16>, vector<8x16xf32> -> vector<8x16xf32>
      %c0_46 = arith.constant 0 : index
      %c0_47 = arith.constant 0 : index
      %64 = vector.load %arg9[%c0_46, %c0_47] : memref<1x16xf32, #tpu.memory_space<vmem>>, vector<1x16xf32>
      %65 = vector.broadcast %64 : vector<1x16xf32> to vector<8x16xf32>
      %66 = arith.addf %63, %65 : vector<8x16xf32>
      %cst_48 = arith.constant 0.000000e+00 : f32
      %67 = vector.broadcast %cst_48 : f32 to vector<8x16xf32>
      %68 = arith.maximumf %66, %67 : vector<8x16xf32>
      %69 = arith.truncf %68 : vector<8x16xf32> to vector<8x16xbf16>
      %c0_49 = arith.constant 0 : index
      %c0_50 = arith.constant 0 : index
      %70 = vector.load %arg10[%c0_49, %c0_50] : memref<16x16xbf16, #tpu.memory_space<vmem>>, vector<16x16xbf16>
      %cst_51 = arith.constant dense<0.000000e+00> : vector<8x16xf32>
      %71 = tpu.matmul %69, %70, %cst_51 {dimension_numbers = #tpu.dot_dimension_numbers<[1], [1], [0], [0], [0, 0, 1, 0], [], []>} : vector<8x16xbf16>, vector<16x16xbf16>, vector<8x16xf32> -> vector<8x16xf32>
      %c0_52 = arith.constant 0 : index
      %c0_53 = arith.constant 0 : index
      %72 = vector.load %arg11[%c0_52, %c0_53] : memref<1x16xf32, #tpu.memory_space<vmem>>, vector<1x16xf32>
      %73 = vector.broadcast %72 : vector<1x16xf32> to vector<8x16xf32>
      %74 = arith.addf %71, %73 : vector<8x16xf32>
      %cst_54 = arith.constant 0.000000e+00 : f32
      %75 = vector.broadcast %cst_54 : f32 to vector<8x16xf32>
      %76 = arith.maximumf %74, %75 : vector<8x16xf32>
      %c0_55 = arith.constant 0 : index
      %c0_56 = arith.constant 0 : index
      %77 = vector.load %arg20[%c0_55, %c0_56] : memref<8x16xf32, #tpu.memory_space<vmem>>, vector<8x16xf32>
      tpu.vector_store %arg20[%c0_55, %c0_56], %76 {strides = array<i32>} : memref<8x16xf32, #tpu.memory_space<vmem>>, vector<8x16xf32>,
      %c0_57 = arith.constant 0 : index
      %c0_58 = arith.constant 0 : index
      %78 = vector.load %arg12[%c0_57, %c0_58] : memref<16x32xbf16, #tpu.memory_space<vmem>>, vector<16x32xbf16>
      %cst_59 = arith.constant dense<0.000000e+00> : vector<16x8xf32>
      %79 = tpu.matmul %78, %61, %cst_59 {dimension_numbers = #tpu.dot_dimension_numbers<[1], [1], [0], [0], [0, 0, 1, 0], [], []>} : vector<16x32xbf16>, vector<8x32xbf16>, vector<16x8xf32> -> vector<16x8xf32>
      %c0_60 = arith.constant 0 : index
      %c0_61 = arith.constant 0 : index
      %80 = vector.load %arg13[%c0_60, %c0_61] : memref<16x1xf32, #tpu.memory_space<vmem>>, vector<16x1xf32>
      %81 = vector.broadcast %80 : vector<16x1xf32> to vector<16x8xf32>
      %82 = arith.addf %79, %81 : vector<16x8xf32>
      %cst_62 = arith.constant 0.000000e+00 : f32
      %83 = vector.broadcast %cst_62 : f32 to vector<16x8xf32>
      %84 = arith.maximumf %82, %83 : vector<16x8xf32>
      %c0_63 = arith.constant 0 : index
      %c0_64 = arith.constant 0 : index
      %85 = vector.load %arg21[%c0_63, %c0_64] : memref<16x8xf32, #tpu.memory_space<vmem>>, vector<16x8xf32>
      tpu.vector_store %arg21[%c0_63, %c0_64], %84 {strides = array<i32>} : memref<16x8xf32, #tpu.memory_space<vmem>>, vector<16x8xf32>,
    } else {
    }
    %c0_3 = arith.constant 0 : index
    %c0_4 = arith.constant 0 : index
    %5 = vector.load %arg4[%c0_3, %c0_4] : memref<16x32xbf16, #tpu.memory_space<vmem>>, vector<16x32xbf16>
    %cst = arith.constant dense<0.000000e+00> : vector<16x128xf32>
    %6 = tpu.matmul %5, %1, %cst {dimension_numbers = #tpu.dot_dimension_numbers<[1], [0], [0], [1], [0, 0, 1, 1], [], []>} : vector<16x32xbf16>, vector<32x128xbf16>, vector<16x128xf32> -> vector<16x128xf32>
    %c0_5 = arith.constant 0 : index
    %c0_6 = arith.constant 0 : index
    %7 = vector.load %arg5[%c0_5, %c0_6] : memref<16x1xf32, #tpu.memory_space<vmem>>, vector<16x1xf32>
    %8 = vector.broadcast %7 : vector<16x1xf32> to vector<16x128xf32>
    %9 = arith.addf %6, %8 : vector<16x128xf32>
    %cst_7 = arith.constant 0.000000e+00 : f32
    %10 = vector.broadcast %cst_7 : f32 to vector<16x128xf32>
    %11 = arith.maximumf %9, %10 : vector<16x128xf32>
    %c0_8 = arith.constant 0 : index
    %c0_9 = arith.constant 0 : index
    %12 = vector.load %arg6[%c0_8, %c0_9] : memref<16x16xbf16, #tpu.memory_space<vmem>>, vector<16x16xbf16>
    %13 = arith.truncf %11 : vector<16x128xf32> to vector<16x128xbf16>
    %cst_10 = arith.constant dense<0.000000e+00> : vector<16x128xf32>
    %14 = tpu.matmul %12, %13, %cst_10 {dimension_numbers = #tpu.dot_dimension_numbers<[1], [0], [0], [1], [0, 0, 1, 1], [], []>} : vector<16x16xbf16>, vector<16x128xbf16>, vector<16x128xf32> -> vector<16x128xf32>
    %c0_11 = arith.constant 0 : index
    %c0_12 = arith.constant 0 : index
    %15 = vector.load %arg7[%c0_11, %c0_12] : memref<16x1xf32, #tpu.memory_space<vmem>>, vector<16x1xf32>
    %16 = vector.broadcast %15 : vector<16x1xf32> to vector<16x128xf32>
    %17 = arith.addf %14, %16 : vector<16x128xf32>
    %cst_13 = arith.constant 0.000000e+00 : f32
    %18 = vector.broadcast %cst_13 : f32 to vector<16x128xf32>
    %19 = arith.maximumf %17, %18 : vector<16x128xf32>
    %c0_14 = arith.constant 0 : index
    %c0_15 = arith.constant 0 : index
    %20 = vector.load %arg20[%c0_14, %c0_15] : memref<8x16xf32, #tpu.memory_space<vmem>>, vector<8x16xf32>
    %21 = arith.truncf %20 : vector<8x16xf32> to vector<8x16xbf16>
    %22 = arith.truncf %19 : vector<16x128xf32> to vector<16x128xbf16>
    %cst_16 = arith.constant dense<0.000000e+00> : vector<8x128xf32>
    %23 = tpu.matmul %21, %22, %cst_16 {dimension_numbers = #tpu.dot_dimension_numbers<[1], [0], [0], [1], [0, 0, 1, 1], [], []>} : vector<8x16xbf16>, vector<16x128xbf16>, vector<8x128xf32> -> vector<8x128xf32>
    %cst_17 = arith.constant dense<0xFF800000> : vector<128xf32>
    %24 = vector.multi_reduction <maximumf>, %23, %cst_17 [0] : vector<8x128xf32> to vector<128xf32>
    %25 = vector.shape_cast %24 : vector<128xf32> to vector<1x128xf32>
    %26 = vector.broadcast %25 : vector<1x128xf32> to vector<8x128xf32>
    %27 = arith.subf %23, %26 : vector<8x128xf32>
    %28 = math.exp %27 : vector<8x128xf32>
    %cst_18 = arith.constant dense<0.000000e+00> : vector<128xf32>
    %29 = vector.multi_reduction <add>, %28, %cst_18 [0] : vector<8x128xf32> to vector<128xf32>
    %30 = vector.shape_cast %29 : vector<128xf32> to vector<1x128xf32>
    %31 = tpu.reciprocal %30 {approx = true} : vector<1x128xf32> -> vector<1x128xf32>
    %32 = vector.broadcast %31 : vector<1x128xf32> to vector<8x128xf32>
    %33 = arith.mulf %28, %32 : vector<8x128xf32>
    %c0_19 = arith.constant 0 : index
    %c0_20 = arith.constant 0 : index
    %34 = vector.load %arg21[%c0_19, %c0_20] : memref<16x8xf32, #tpu.memory_space<vmem>>, vector<16x8xf32>
    %35 = arith.truncf %34 : vector<16x8xf32> to vector<16x8xbf16>
    %36 = arith.truncf %33 : vector<8x128xf32> to vector<8x128xbf16>
    %cst_21 = arith.constant dense<0.000000e+00> : vector<16x128xf32>
    %37 = tpu.matmul %35, %36, %cst_21 {dimension_numbers = #tpu.dot_dimension_numbers<[1], [0], [0], [1], [0, 0, 1, 1], [], []>} : vector<16x8xbf16>, vector<8x128xbf16>, vector<16x128xf32> -> vector<16x128xf32>
    %c0_22 = arith.constant 0 : index
    %c0_23 = arith.constant 0 : index
    %38 = vector.load %arg14[%c0_22, %c0_23] : memref<32x16xbf16, #tpu.memory_space<vmem>>, vector<32x16xbf16>
    %39 = arith.truncf %37 : vector<16x128xf32> to vector<16x128xbf16>
    %cst_24 = arith.constant dense<0.000000e+00> : vector<32x128xf32>
    %40 = tpu.matmul %38, %39, %cst_24 {dimension_numbers = #tpu.dot_dimension_numbers<[1], [0], [0], [1], [0, 0, 1, 1], [], []>} : vector<32x16xbf16>, vector<16x128xbf16>, vector<32x128xf32> -> vector<32x128xf32>
    %c0_25 = arith.constant 0 : index
    %c0_26 = arith.constant 0 : index
    %41 = vector.load %arg15[%c0_25, %c0_26] : memref<32x1xf32, #tpu.memory_space<vmem>>, vector<32x1xf32>
    %42 = vector.broadcast %41 : vector<32x1xf32> to vector<32x128xf32>
    %43 = arith.addf %40, %42 : vector<32x128xf32>
    %cst_27 = arith.constant 0.000000e+00 : f32
    %44 = vector.broadcast %cst_27 : f32 to vector<32x128xf32>
    %45 = arith.maximumf %43, %44 : vector<32x128xf32>
    %c0_28 = arith.constant 0 : index
    %c0_29 = arith.constant 0 : index
    %46 = vector.load %arg16[%c0_28, %c0_29] : memref<32x32xbf16, #tpu.memory_space<vmem>>, vector<32x32xbf16>
    %47 = arith.truncf %45 : vector<32x128xf32> to vector<32x128xbf16>
    %cst_30 = arith.constant dense<0.000000e+00> : vector<32x128xf32>
    %48 = tpu.matmul %46, %47, %cst_30 {dimension_numbers = #tpu.dot_dimension_numbers<[1], [0], [0], [1], [0, 0, 1, 1], [], []>} : vector<32x32xbf16>, vector<32x128xbf16>, vector<32x128xf32> -> vector<32x128xf32>
    %c0_31 = arith.constant 0 : index
    %c0_32 = arith.constant 0 : index
    %49 = vector.load %arg17[%c0_31, %c0_32] : memref<32x32xbf16, #tpu.memory_space<vmem>>, vector<32x32xbf16>
    %cst_33 = arith.constant dense<0.000000e+00> : vector<32x128xf32>
    %50 = tpu.matmul %49, %1, %cst_33 {dimension_numbers = #tpu.dot_dimension_numbers<[1], [0], [0], [1], [0, 0, 1, 1], [], []>} : vector<32x32xbf16>, vector<32x128xbf16>, vector<32x128xf32> -> vector<32x128xf32>
    %51 = arith.addf %48, %50 : vector<32x128xf32>
    %c0_34 = arith.constant 0 : index
    %c0_35 = arith.constant 0 : index
    %52 = vector.load %arg18[%c0_34, %c0_35] : memref<32x1xf32, #tpu.memory_space<vmem>>, vector<32x1xf32>
    %53 = vector.broadcast %52 : vector<32x1xf32> to vector<32x128xf32>
    %54 = arith.addf %51, %53 : vector<32x128xf32>
    %cst_36 = arith.constant 0.000000e+00 : f32
    %55 = vector.broadcast %cst_36 : f32 to vector<32x128xf32>
    %56 = arith.maximumf %54, %55 : vector<32x128xf32>
    %c0_37 = arith.constant 0 : index
    %c0_38 = arith.constant 0 : index
    %c0_39 = arith.constant 0 : index
    %57 = vector.load %arg19[%c0_37, %c0_38, %c0_39] : memref<1x32x128xf32, #tpu.memory_space<vmem>>, vector<1x32x128xf32>
    %58 = vector.shape_cast %57 : vector<1x32x128xf32> to vector<32x128xf32>
    %59 = vector.shape_cast %56 : vector<32x128xf32> to vector<1x32x128xf32>
    tpu.vector_store %arg19[%c0_37, %c0_38, %c0_39], %59 {strides = array<i32>} : memref<1x32x128xf32, #tpu.memory_space<vmem>>, vector<1x32x128xf32>,
    return
  }
  func.func @transform_0(%arg0: i32, %arg1: i32) -> (i32, i32, i32) {
    %c0_i32 = arith.constant 0 : i32
    %c0_i32_0 = arith.constant 0 : i32
    return %arg0, %c0_i32, %arg1 : i32, i32, i32
  }
  func.func @transform_1(%arg0: i32, %arg1: i32) -> (i32, i32, i32) {
    %c0_i32 = arith.constant 0 : i32
    %c0_i32_0 = arith.constant 0 : i32
    %c0_i32_1 = arith.constant 0 : i32
    return %arg0, %c0_i32, %c0_i32_0 : i32, i32, i32
  }
  func.func @transform_2(%arg0: i32, %arg1: i32) -> (i32, i32) {
    %c0_i32 = arith.constant 0 : i32
    %c0_i32_0 = arith.constant 0 : i32
    %c0_i32_1 = arith.constant 0 : i32
    return %c0_i32, %c0_i32_0 : i32, i32
  }
  func.func @transform_3(%arg0: i32, %arg1: i32) -> (i32, i32) {
    %c0_i32 = arith.constant 0 : i32
    %c0_i32_0 = arith.constant 0 : i32
    %c0_i32_1 = arith.constant 0 : i32
    return %c0_i32, %c0_i32_0 : i32, i32
  }
  func.func @transform_4(%arg0: i32, %arg1: i32) -> (i32, i32) {
    %c0_i32 = arith.constant 0 : i32
    %c0_i32_0 = arith.constant 0 : i32
    %c0_i32_1 = arith.constant 0 : i32
    return %c0_i32, %c0_i32_0 : i32, i32
  }
  func.func @transform_5(%arg0: i32, %arg1: i32) -> (i32, i32) {
    %c0_i32 = arith.constant 0 : i32
    %c0_i32_0 = arith.constant 0 : i32
    %c0_i32_1 = arith.constant 0 : i32
    return %c0_i32, %c0_i32_0 : i32, i32
  }
  func.func @transform_6(%arg0: i32, %arg1: i32) -> (i32, i32) {
    %c0_i32 = arith.constant 0 : i32
    %c0_i32_0 = arith.constant 0 : i32
    %c0_i32_1 = arith.constant 0 : i32
    return %c0_i32, %c0_i32_0 : i32, i32
  }
  func.func @transform_7(%arg0: i32, %arg1: i32) -> (i32, i32) {
    %c0_i32 = arith.constant 0 : i32
    %c0_i32_0 = arith.constant 0 : i32
    %c0_i32_1 = arith.constant 0 : i32
    return %c0_i32, %c0_i32_0 : i32, i32
  }
  func.func @transform_8(%arg0: i32, %arg1: i32) -> (i32, i32) {
    %c0_i32 = arith.constant 0 : i32
    %c0_i32_0 = arith.constant 0 : i32
    %c0_i32_1 = arith.constant 0 : i32
    return %c0_i32, %c0_i32_0 : i32, i32
  }
  func.func @transform_9(%arg0: i32, %arg1: i32) -> (i32, i32) {
    %c0_i32 = arith.constant 0 : i32
    %c0_i32_0 = arith.constant 0 : i32
    %c0_i32_1 = arith.constant 0 : i32
    return %c0_i32, %c0_i32_0 : i32, i32
  }
  func.func @transform_10(%arg0: i32, %arg1: i32) -> (i32, i32) {
    %c0_i32 = arith.constant 0 : i32
    %c0_i32_0 = arith.constant 0 : i32
    %c0_i32_1 = arith.constant 0 : i32
    return %c0_i32, %c0_i32_0 : i32, i32
  }
  func.func @transform_11(%arg0: i32, %arg1: i32) -> (i32, i32) {
    %c0_i32 = arith.constant 0 : i32
    %c0_i32_0 = arith.constant 0 : i32
    %c0_i32_1 = arith.constant 0 : i32
    return %c0_i32, %c0_i32_0 : i32, i32
  }
  func.func @transform_12(%arg0: i32, %arg1: i32) -> (i32, i32) {
    %c0_i32 = arith.constant 0 : i32
    %c0_i32_0 = arith.constant 0 : i32
    %c0_i32_1 = arith.constant 0 : i32
    return %c0_i32, %c0_i32_0 : i32, i32
  }
  func.func @transform_13(%arg0: i32, %arg1: i32) -> (i32, i32) {
    %c0_i32 = arith.constant 0 : i32
    %c0_i32_0 = arith.constant 0 : i32
    %c0_i32_1 = arith.constant 0 : i32
    return %c0_i32, %c0_i32_0 : i32, i32
  }
  func.func @transform_14(%arg0: i32, %arg1: i32) -> (i32, i32) {
    %c0_i32 = arith.constant 0 : i32
    %c0_i32_0 = arith.constant 0 : i32
    %c0_i32_1 = arith.constant 0 : i32
    return %c0_i32, %c0_i32_0 : i32, i32
  }
  func.func @transform_15(%arg0: i32, %arg1: i32) -> (i32, i32) {
    %c0_i32 = arith.constant 0 : i32
    %c0_i32_0 = arith.constant 0 : i32
    %c0_i32_1 = arith.constant 0 : i32
    return %c0_i32, %c0_i32_0 : i32, i32
  }
  func.func @transform_16(%arg0: i32, %arg1: i32) -> (i32, i32) {
    %c0_i32 = arith.constant 0 : i32
    %c0_i32_0 = arith.constant 0 : i32
    %c0_i32_1 = arith.constant 0 : i32
    return %c0_i32, %c0_i32_0 : i32, i32
  }
  func.func @transform_17(%arg0: i32, %arg1: i32) -> (i32, i32, i32) {
    %c0_i32 = arith.constant 0 : i32
    %c0_i32_0 = arith.constant 0 : i32
    return %arg0, %c0_i32, %arg1 : i32, i32, i32
  }
}

</mosaic_0001>

<llo_original>
// kernel: tpu_custom_call.1
$region0: #{tpu_custom_call.1}
  #allocation0 [shape = 'u32[]', space=smem, size = 0x4, offset = 0x4, fixed_abs, tag = 'smem constant byte address 0x4 - core index']
  #allocation1 [shape = 'u32[144,128]{1,0:T(1,128)}', space=vmem, size = 0x12000, scoped, tag = 'internal scratch']
  #allocation2 [shape = 'f32[8,16]{1,0:T(8,128)}', space=vmem, size = 0x1000, scoped, tag = 'scratch operand']
  #allocation3 [shape = 'f32[16,8]{1,0:T(8,128)}', space=vmem, size = 0x2000, scoped, tag = 'scratch operand']
  %s0 = inlined_call_operand.vmem [shape: bf16[2,32,256], index: 0, kind: input, shape index: {}]
  %s1 = inlined_call_operand.vmem [shape: bf16[2,8,32], index: 1, kind: input, shape index: {}]
  %s2 = inlined_call_operand.vmem [shape: bf16[16,32], index: 2, kind: input, shape index: {}]
  %s3 = inlined_call_operand.vmem [shape: f32[16,1], index: 3, kind: input, shape index: {}]
  %s4 = inlined_call_operand.vmem [shape: bf16[16,16], index: 4, kind: input, shape index: {}]
  %s5 = inlined_call_operand.vmem [shape: f32[16,1], index: 5, kind: input, shape index: {}]
  %s6 = inlined_call_operand.vmem [shape: bf16[16,32], index: 6, kind: input, shape index: {}]
  %s7 = inlined_call_operand.hbm [shape: f32[1,16], index: 7, kind: input, shape index: {}]
  %s8 = inlined_call_operand.vmem [shape: bf16[16,16], index: 8, kind: input, shape index: {}]
  %s9 = inlined_call_operand.vmem [shape: f32[1,16], index: 9, kind: input, shape index: {}]
  %s10 = inlined_call_operand.vmem [shape: bf16[16,32], index: 10, kind: input, shape index: {}]
  %s11 = inlined_call_operand.vmem [shape: f32[16,1], index: 11, kind: input, shape index: {}]
  %s12 = inlined_call_operand.vmem [shape: bf16[32,16], index: 12, kind: input, shape index: {}]
  %s13 = inlined_call_operand.vmem [shape: f32[32,1], index: 13, kind: input, shape index: {}]
  %s14 = inlined_call_operand.vmem [shape: bf16[32,32], index: 14, kind: input, shape index: {}]
  %s15 = inlined_call_operand.vmem [shape: bf16[32,32], index: 15, kind: input, shape index: {}]
  %s16 = inlined_call_operand.vmem [shape: f32[32,1], index: 16, kind: input, shape index: {}]
  %s17 = inlined_call_operand.hbm [shape: f32[2,32,256], index: 17, kind: output, shape index: {}]
  %s18 = sld [smem:[#allocation0]]
  $region150: #{tpu_custom_call.1} parent=0
    _
  %s20 = ssub.s32 1, %s18
  %s21 = scalar_select 0, %s20, %s18
  $region1: #{tpu_custom_call.1} parent=0
    #allocation4 [shape = 'u8[16384]{0}', space=vmem, size = 0x4000, scoped, tag = 'input window, operand 0']
    #allocation5 [shape = 'u8[512]{0}', space=vmem, size = 0x400, scoped, tag = 'input window, operand 7, single buffered']
    #allocation6 [shape = 's32[2]{0}', space=sflag, size = 0x8, scoped, tag = 'scoped memory for tpu_custom_call.1']
    #allocation7 [shape = 's32[2]{0}', space=sflag, size = 0x8, scoped, tag = 'scoped memory for tpu_custom_call.1']
    #allocation8 [shape = 'u8[32768]{0}', space=vmem, size = 0x8000, scoped, tag = 'output window, operand 0']
    %22 = vsyncpa [#allocation6], 0
    %23 = vsyncpa [#allocation7], 0
    %s24 = scalar_lea.sflag [#allocation7], 1
    %25 = vsyncpa %s24, 0
    loop: start=0, step=1, limit=6
    $region2: #{tpu_custom_call.1} parent=1 // loop_pre_header
      _
    $region3: #{tpu_custom_call.1} parent=1 // loop_header
      %s27 = sphi 0, %s31
      %p28 = scmp.ge.s32.totalorder %s27, 6
      %s34 = sphi 0, %s46
      %s35 = sphi 0, %s42
      %s36 = sphi 0, %s34
      %s37 = sphi 0, %s35
      %s38 = sphi 0, %s36
      %s39 = sphi 0, %s37
      %s51 = sphi 0, %s53
      %s54 = sphi 0, %s51
      %s55 = sphi 0, %s54
      %s71 = sphi 0, %s55
      %s77 = sphi 0, %s79
      %s80 = sphi 0, %s77
      %s81 = sphi 0, %s80
      %s97 = sphi 0, %s81
      %s101 = sphi 0, %s101
      %s103 = sphi 0, %s101
      %s104 = sphi 0, %s103
      %s118 = sphi 0, %s104
      %s122 = sphi 0, %s122
      %s124 = sphi 0, %s122
      %s125 = sphi 0, %s124
      %s139 = sphi 0, %s125
      %s143 = sphi 0, %s143
      %s145 = sphi 0, %s143
      %s146 = sphi 0, %s145
      %s160 = sphi 0, %s146
      %s164 = sphi 0, %s164
      %s166 = sphi 0, %s164
      %s167 = sphi 0, %s166
      %s181 = sphi 0, %s167
      %s185 = sphi 0, %s185
      %s187 = sphi 0, %s185
      %s188 = sphi 0, %s187
      %s202 = sphi 0, %s188
      %s206 = sphi 0, %s206
      %s208 = sphi 0, %s206
      %s209 = sphi 0, %s208
      %s223 = sphi 0, %s209
      %s227 = sphi 0, %s227
      %s229 = sphi 0, %s227
      %s230 = sphi 0, %s229
      %s244 = sphi 0, %s230
      %s248 = sphi 0, %s248
      %s250 = sphi 0, %s248
      %s251 = sphi 0, %s250
      %s265 = sphi 0, %s251
      %s269 = sphi 0, %s269
      %s271 = sphi 0, %s269
      %s272 = sphi 0, %s271
      %s286 = sphi 0, %s272
      %s290 = sphi 0, %s290
      %s292 = sphi 0, %s290
      %s293 = sphi 0, %s292
      %s307 = sphi 0, %s293
      %s311 = sphi 0, %s311
      %s313 = sphi 0, %s311
      %s314 = sphi 0, %s313
      %s328 = sphi 0, %s314
      %s332 = sphi 0, %s332
      %s334 = sphi 0, %s332
      %s335 = sphi 0, %s334
      %s349 = sphi 0, %s335
      %s353 = sphi 0, %s353
      %s355 = sphi 0, %s353
      %s356 = sphi 0, %s355
      %s370 = sphi 0, %s356
      %s374 = sphi 0, %s374
      %s376 = sphi 0, %s374
      %s377 = sphi 0, %s376
      %s391 = sphi 0, %s377
      %s395 = sphi 0, %s395
      %s397 = sphi 0, %s395
      %s398 = sphi 0, %s397
      %s412 = sphi 0, %s398
      %s420 = sphi 0, %s422
      %s423 = sphi 0, %s420
      %s424 = sphi 0, %s423
      %s440 = sphi 0, %s424
    $region4: #{tpu_custom_call.1} parent=1 // loop_header_branch
      %30 = sbr.rel (%p28) target = $region8
    $region5: #{tpu_custom_call.1} parent=1 // loop_body
      %s32 = ssub.s32 %s27, 1
      %s33 = ssub.s32 %s27, 2
      %s40 = sadd.s32 1, %s35
      %p41 = scmp.ge.s32.totalorder %s40, 2
      %s42 = scalar_select %p41, 0, %s40
      %s43 = sadd.s32 1, %s34
      %s44 = scalar_select %p41, %s43, %s34
      %p45 = scmp.ge.s32.totalorder %s44, 2
      %s46 = scalar_select %p45, 0, %s44
      %s47 = ssub.s32 %s34, %s46
      %s48 = ssub.s32 %s35, %s42
      %s49 = sor.u32 %s47, %s48
      %p50 = scmp.eq.s32.totalorder %s49, 0
      %s52 = sadd.s32 %s51, 1
      %s53 = scalar_select %p50, %s51, %s52
      %p56 = pneg %p50
      %p57 = scmp.eq.s32.totalorder %s27, 3
      %p58 = por %p56, %p57
      %p59 = scmp.ne.s32.totalorder %s51, %s54
      %p60 = scmp.eq.s32.totalorder %s27, 0
      %p61 = por %p59, %p60
      %p62 = scmp.ne.s32.totalorder %s51, %s54
      %p63 = scmp.eq.s32.totalorder %s32, 3
      %p64 = por %p62, %p63
      %p65 = scmp.ne.s32.totalorder %s54, %s55
      %p66 = scmp.eq.s32.totalorder %s32, 0
      %p67 = por %p65, %p66
      %p68 = scmp.ne.s32.totalorder %s54, %s55
      %p69 = scmp.eq.s32.totalorder %s33, 3
      %p70 = por %p68, %p69
      %p72 = scmp.ne.s32.totalorder %s55, %s71
      %p73 = scmp.eq.s32.totalorder %s33, 0
      %p74 = por %p72, %p73
      %s75 = ssub.s32 %s34, %s46
      %p76 = scmp.eq.s32.totalorder %s75, 0
      %s78 = sadd.s32 %s77, 1
      %s79 = scalar_select %p76, %s77, %s78
      %p82 = pneg %p76
      %p83 = scmp.eq.s32.totalorder %s27, 3
      %p84 = por %p82, %p83
      %p85 = scmp.ne.s32.totalorder %s77, %s80
      %p86 = scmp.eq.s32.totalorder %s27, 0
      %p87 = por %p85, %p86
      %p88 = scmp.ne.s32.totalorder %s77, %s80
      %p89 = scmp.eq.s32.totalorder %s32, 3
      %p90 = por %p88, %p89
      %p91 = scmp.ne.s32.totalorder %s80, %s81
      %p92 = scmp.eq.s32.totalorder %s32, 0
      %p93 = por %p91, %p92
      %p94 = scmp.ne.s32.totalorder %s80, %s81
      %p95 = scmp.eq.s32.totalorder %s33, 3
      %p96 = por %p94, %p95
      %p98 = scmp.ne.s32.totalorder %s81, %s97
      %p99 = scmp.eq.s32.totalorder %s33, 0
      %p100 = por %p98, %p99
      %s102 = sadd.s32 %s101, 1
      %p105 = scmp.eq.s32.totalorder %s27, 3
      %p106 = scmp.ne.s32.totalorder %s101, %s103
      %p107 = scmp.eq.s32.totalorder %s27, 0
      %p108 = por %p106, %p107
      %p109 = scmp.ne.s32.totalorder %s101, %s103
      %p110 = scmp.eq.s32.totalorder %s32, 3
      %p111 = por %p109, %p110
      %p112 = scmp.ne.s32.totalorder %s103, %s104
      %p113 = scmp.eq.s32.totalorder %s32, 0
      %p114 = por %p112, %p113
      %p115 = scmp.ne.s32.totalorder %s103, %s104
      %p116 = scmp.eq.s32.totalorder %s33, 3
      %p117 = por %p115, %p116
      %p119 = scmp.ne.s32.totalorder %s104, %s118
      %p120 = scmp.eq.s32.totalorder %s33, 0
      %p121 = por %p119, %p120
      %s123 = sadd.s32 %s122, 1
      %p126 = scmp.eq.s32.totalorder %s27, 3
      %p127 = scmp.ne.s32.totalorder %s122, %s124
      %p128 = scmp.eq.s32.totalorder %s27, 0
      %p129 = por %p127, %p128
      %p130 = scmp.ne.s32.totalorder %s122, %s124
      %p131 = scmp.eq.s32.totalorder %s32, 3
      %p132 = por %p130, %p131
      %p133 = scmp.ne.s32.totalorder %s124, %s125
      %p134 = scmp.eq.s32.totalorder %s32, 0
      %p135 = por %p133, %p134
      %p136 = scmp.ne.s32.totalorder %s124, %s125
      %p137 = scmp.eq.s32.totalorder %s33, 3
      %p138 = por %p136, %p137
      %p140 = scmp.ne.s32.totalorder %s125, %s139
      %p141 = scmp.eq.s32.totalorder %s33, 0
      %p142 = por %p140, %p141
      %s144 = sadd.s32 %s143, 1
      %p147 = scmp.eq.s32.totalorder %s27, 3
      %p148 = scmp.ne.s32.totalorder %s143, %s145
      %p149 = scmp.eq.s32.totalorder %s27, 0
      %p150 = por %p148, %p149
      %p151 = scmp.ne.s32.totalorder %s143, %s145
      %p152 = scmp.eq.s32.totalorder %s32, 3
      %p153 = por %p151, %p152
      %p154 = scmp.ne.s32.totalorder %s145, %s146
      %p155 = scmp.eq.s32.totalorder %s32, 0
      %p156 = por %p154, %p155
      %p157 = scmp.ne.s32.totalorder %s145, %s146
      %p158 = scmp.eq.s32.totalorder %s33, 3
      %p159 = por %p157, %p158
      %p161 = scmp.ne.s32.totalorder %s146, %s160
      %p162 = scmp.eq.s32.totalorder %s33, 0
      %p163 = por %p161, %p162
      %s165 = sadd.s32 %s164, 1
      %p168 = scmp.eq.s32.totalorder %s27, 3
      %p169 = scmp.ne.s32.totalorder %s164, %s166
      %p170 = scmp.eq.s32.totalorder %s27, 0
      %p171 = por %p169, %p170
      %p172 = scmp.ne.s32.totalorder %s164, %s166
      %p173 = scmp.eq.s32.totalorder %s32, 3
      %p174 = por %p172, %p173
      %p175 = scmp.ne.s32.totalorder %s166, %s167
      %p176 = scmp.eq.s32.totalorder %s32, 0
      %p177 = por %p175, %p176
      %p178 = scmp.ne.s32.totalorder %s166, %s167
      %p179 = scmp.eq.s32.totalorder %s33, 3
      %p180 = por %p178, %p179
      %p182 = scmp.ne.s32.totalorder %s167, %s181
      %p183 = scmp.eq.s32.totalorder %s33, 0
      %p184 = por %p182, %p183
      %s186 = sadd.s32 %s185, 1
      %p189 = scmp.eq.s32.totalorder %s27, 3
      %p190 = scmp.ne.s32.totalorder %s185, %s187
      %p191 = scmp.eq.s32.totalorder %s27, 0
      %p192 = por %p190, %p191
      %p193 = scmp.ne.s32.totalorder %s185, %s187
      %p194 = scmp.eq.s32.totalorder %s32, 3
      %p195 = por %p193, %p194
      %p196 = scmp.ne.s32.totalorder %s187, %s188
      %p197 = scmp.eq.s32.totalorder %s32, 0
      %p198 = por %p196, %p197
      %p199 = scmp.ne.s32.totalorder %s187, %s188
      %p200 = scmp.eq.s32.totalorder %s33, 3
      %p201 = por %p199, %p200
      %p203 = scmp.ne.s32.totalorder %s188, %s202
      %p204 = scmp.eq.s32.totalorder %s33, 0
      %p205 = por %p203, %p204
      %s207 = sadd.s32 %s206, 1
      %p210 = scmp.eq.s32.totalorder %s27, 3
      %p211 = scmp.ne.s32.totalorder %s206, %s208
      %p212 = scmp.eq.s32.totalorder %s27, 0
      %p213 = por %p211, %p212
      %p214 = scmp.ne.s32.totalorder %s206, %s208
      %p215 = scmp.eq.s32.totalorder %s32, 3
      %p216 = por %p214, %p215
      %p217 = scmp.ne.s32.totalorder %s208, %s209
      %p218 = scmp.eq.s32.totalorder %s32, 0
      %p219 = por %p217, %p218
      %p220 = scmp.ne.s32.totalorder %s208, %s209
      %p221 = scmp.eq.s32.totalorder %s33, 3
      %p222 = por %p220, %p221
      %p224 = scmp.ne.s32.totalorder %s209, %s223
      %p225 = scmp.eq.s32.totalorder %s33, 0
      %p226 = por %p224, %p225
      %s228 = sadd.s32 %s227, 1
      %p231 = scmp.eq.s32.totalorder %s27, 3
      %p232 = scmp.ne.s32.totalorder %s227, %s229
      %p233 = scmp.eq.s32.totalorder %s27, 0
      %p234 = por %p232, %p233
      %p235 = scmp.ne.s32.totalorder %s227, %s229
      %p236 = scmp.eq.s32.totalorder %s32, 3
      %p237 = por %p235, %p236
      %p238 = scmp.ne.s32.totalorder %s229, %s230
      %p239 = scmp.eq.s32.totalorder %s32, 0
      %p240 = por %p238, %p239
      %p241 = scmp.ne.s32.totalorder %s229, %s230
      %p242 = scmp.eq.s32.totalorder %s33, 3
      %p243 = por %p241, %p242
      %p245 = scmp.ne.s32.totalorder %s230, %s244
      %p246 = scmp.eq.s32.totalorder %s33, 0
      %p247 = por %p245, %p246
      %s249 = sadd.s32 %s248, 1
      %p252 = scmp.eq.s32.totalorder %s27, 3
      %p253 = scmp.ne.s32.totalorder %s248, %s250
      %p254 = scmp.eq.s32.totalorder %s27, 0
      %p255 = por %p253, %p254
      %p256 = scmp.ne.s32.totalorder %s248, %s250
      %p257 = scmp.eq.s32.totalorder %s32, 3
      %p258 = por %p256, %p257
      %p259 = scmp.ne.s32.totalorder %s250, %s251
      %p260 = scmp.eq.s32.totalorder %s32, 0
      %p261 = por %p259, %p260
      %p262 = scmp.ne.s32.totalorder %s250, %s251
      %p263 = scmp.eq.s32.totalorder %s33, 3
      %p264 = por %p262, %p263
      %p266 = scmp.ne.s32.totalorder %s251, %s265
      %p267 = scmp.eq.s32.totalorder %s33, 0
      %p268 = por %p266, %p267
      %s270 = sadd.s32 %s269, 1
      %p273 = scmp.eq.s32.totalorder %s27, 3
      %p274 = scmp.ne.s32.totalorder %s269, %s271
      %p275 = scmp.eq.s32.totalorder %s27, 0
      %p276 = por %p274, %p275
      %p277 = scmp.ne.s32.totalorder %s269, %s271
      %p278 = scmp.eq.s32.totalorder %s32, 3
      %p279 = por %p277, %p278
      %p280 = scmp.ne.s32.totalorder %s271, %s272
      %p281 = scmp.eq.s32.totalorder %s32, 0
      %p282 = por %p280, %p281
      %p283 = scmp.ne.s32.totalorder %s271, %s272
      %p284 = scmp.eq.s32.totalorder %s33, 3
      %p285 = por %p283, %p284
      %p287 = scmp.ne.s32.totalorder %s272, %s286
      %p288 = scmp.eq.s32.totalorder %s33, 0
      %p289 = por %p287, %p288
      %s291 = sadd.s32 %s290, 1
      %p294 = scmp.eq.s32.totalorder %s27, 3
      %p295 = scmp.ne.s32.totalorder %s290, %s292
      %p296 = scmp.eq.s32.totalorder %s27, 0
      %p297 = por %p295, %p296
      %p298 = scmp.ne.s32.totalorder %s290, %s292
      %p299 = scmp.eq.s32.totalorder %s32, 3
      %p300 = por %p298, %p299
      %p301 = scmp.ne.s32.totalorder %s292, %s293
      %p302 = scmp.eq.s32.totalorder %s32, 0
      %p303 = por %p301, %p302
      %p304 = scmp.ne.s32.totalorder %s292, %s293
      %p305 = scmp.eq.s32.totalorder %s33, 3
      %p306 = por %p304, %p305
      %p308 = scmp.ne.s32.totalorder %s293, %s307
      %p309 = scmp.eq.s32.totalorder %s33, 0
      %p310 = por %p308, %p309
      %s312 = sadd.s32 %s311, 1
      %p315 = scmp.eq.s32.totalorder %s27, 3
      %p316 = scmp.ne.s32.totalorder %s311, %s313
      %p317 = scmp.eq.s32.totalorder %s27, 0
      %p318 = por %p316, %p317
      %p319 = scmp.ne.s32.totalorder %s311, %s313
      %p320 = scmp.eq.s32.totalorder %s32, 3
      %p321 = por %p319, %p320
      %p322 = scmp.ne.s32.totalorder %s313, %s314
      %p323 = scmp.eq.s32.totalorder %s32, 0
      %p324 = por %p322, %p323
      %p325 = scmp.ne.s32.totalorder %s313, %s314
      %p326 = scmp.eq.s32.totalorder %s33, 3
      %p327 = por %p325, %p326
      %p329 = scmp.ne.s32.totalorder %s314, %s328
      %p330 = scmp.eq.s32.totalorder %s33, 0
      %p331 = por %p329, %p330
      %s333 = sadd.s32 %s332, 1
      %p336 = scmp.eq.s32.totalorder %s27, 3
      %p337 = scmp.ne.s32.totalorder %s332, %s334
      %p338 = scmp.eq.s32.totalorder %s27, 0
      %p339 = por %p337, %p338
      %p340 = scmp.ne.s32.totalorder %s332, %s334
      %p341 = scmp.eq.s32.totalorder %s32, 3
      %p342 = por %p340, %p341
      %p343 = scmp.ne.s32.totalorder %s334, %s335
      %p344 = scmp.eq.s32.totalorder %s32, 0
      %p345 = por %p343, %p344
      %p346 = scmp.ne.s32.totalorder %s334, %s335
      %p347 = scmp.eq.s32.totalorder %s33, 3
      %p348 = por %p346, %p347
      %p350 = scmp.ne.s32.totalorder %s335, %s349
      %p351 = scmp.eq.s32.totalorder %s33, 0
      %p352 = por %p350, %p351
      %s354 = sadd.s32 %s353, 1
      %p357 = scmp.eq.s32.totalorder %s27, 3
      %p358 = scmp.ne.s32.totalorder %s353, %s355
      %p359 = scmp.eq.s32.totalorder %s27, 0
      %p360 = por %p358, %p359
      %p361 = scmp.ne.s32.totalorder %s353, %s355
      %p362 = scmp.eq.s32.totalorder %s32, 3
      %p363 = por %p361, %p362
      %p364 = scmp.ne.s32.totalorder %s355, %s356
      %p365 = scmp.eq.s32.totalorder %s32, 0
      %p366 = por %p364, %p365
      %p367 = scmp.ne.s32.totalorder %s355, %s356
      %p368 = scmp.eq.s32.totalorder %s33, 3
      %p369 = por %p367, %p368
      %p371 = scmp.ne.s32.totalorder %s356, %s370
      %p372 = scmp.eq.s32.totalorder %s33, 0
      %p373 = por %p371, %p372
      %s375 = sadd.s32 %s374, 1
      %p378 = scmp.eq.s32.totalorder %s27, 3
      %p379 = scmp.ne.s32.totalorder %s374, %s376
      %p380 = scmp.eq.s32.totalorder %s27, 0
      %p381 = por %p379, %p380
      %p382 = scmp.ne.s32.totalorder %s374, %s376
      %p383 = scmp.eq.s32.totalorder %s32, 3
      %p384 = por %p382, %p383
      %p385 = scmp.ne.s32.totalorder %s376, %s377
      %p386 = scmp.eq.s32.totalorder %s32, 0
      %p387 = por %p385, %p386
      %p388 = scmp.ne.s32.totalorder %s376, %s377
      %p389 = scmp.eq.s32.totalorder %s33, 3
      %p390 = por %p388, %p389
      %p392 = scmp.ne.s32.totalorder %s377, %s391
      %p393 = scmp.eq.s32.totalorder %s33, 0
      %p394 = por %p392, %p393
      %s396 = sadd.s32 %s395, 1
      %p399 = scmp.eq.s32.totalorder %s27, 3
      %p400 = scmp.ne.s32.totalorder %s395, %s397
      %p401 = scmp.eq.s32.totalorder %s27, 0
      %p402 = por %p400, %p401
      %p403 = scmp.ne.s32.totalorder %s395, %s397
      %p404 = scmp.eq.s32.totalorder %s32, 3
      %p405 = por %p403, %p404
      %p406 = scmp.ne.s32.totalorder %s397, %s398
      %p407 = scmp.eq.s32.totalorder %s32, 0
      %p408 = por %p406, %p407
      %p409 = scmp.ne.s32.totalorder %s397, %s398
      %p410 = scmp.eq.s32.totalorder %s33, 3
      %p411 = por %p409, %p410
      %p413 = scmp.ne.s32.totalorder %s398, %s412
      %p414 = scmp.eq.s32.totalorder %s33, 0
      %p415 = por %p413, %p414
      %s416 = ssub.s32 %s34, %s46
      %s417 = ssub.s32 %s35, %s42
      %s418 = sor.u32 %s416, %s417
      %p419 = scmp.eq.s32.totalorder %s418, 0
      %s421 = sadd.s32 %s420, 1
      %s422 = scalar_select %p419, %s420, %s421
      %p425 = pneg %p419
      %p426 = scmp.eq.s32.totalorder %s27, 3
      %p427 = por %p425, %p426
      %p428 = scmp.ne.s32.totalorder %s420, %s423
      %p429 = scmp.eq.s32.totalorder %s27, 0
      %p430 = por %p428, %p429
      %p431 = scmp.ne.s32.totalorder %s420, %s423
      %p432 = scmp.eq.s32.totalorder %s32, 3
      %p433 = por %p431, %p432
      %p434 = scmp.ne.s32.totalorder %s423, %s424
      %p435 = scmp.eq.s32.totalorder %s32, 0
      %p436 = por %p434, %p435
      %p437 = scmp.ne.s32.totalorder %s423, %s424
      %p438 = scmp.eq.s32.totalorder %s33, 3
      %p439 = por %p437, %p438
      %p441 = scmp.ne.s32.totalorder %s424, %s440
      %p442 = scmp.eq.s32.totalorder %s33, 0
      %p443 = por %p441, %p442
      %p444 = scmp.le.s32.totalorder 1, %s27
      %p445 = scmp.lt.s32.totalorder %s27, 5
      %p446 = pnand %p444, %p445
      %p447 = pneg %p446
      // Predicated region
      $region9: #{tpu_custom_call.1} parent=5 // pred_check
        _
      $region10: #{tpu_custom_call.1} parent=5 // pred_check_branch
        %449 = sbr.rel (%p446) target = $region12
      $region11: #{tpu_custom_call.1} parent=5 // pred_region
        %s450 = ssub.s32 %s27, 1
        // Predicated region
        $region13: #{tpu_custom_call.1} parent=11 // pred_check
          %p451 = pneg %p114
        $region14: #{tpu_custom_call.1} parent=11 // pred_check_branch
          %453 = sbr.rel (%p451) target = $region16
        $region15: #{tpu_custom_call.1} parent=11 // pred_region
          _
        $region16: #{tpu_custom_call.1} parent=11 // pred_fallthru
          _
        // Predicated region
        $region17: #{tpu_custom_call.1} parent=11 // pred_check
          %p454 = pneg %p135
        $region18: #{tpu_custom_call.1} parent=11 // pred_check_branch
          %456 = sbr.rel (%p454) target = $region20
        $region19: #{tpu_custom_call.1} parent=11 // pred_region
          _
        $region20: #{tpu_custom_call.1} parent=11 // pred_fallthru
          _
        // Predicated region
        $region21: #{tpu_custom_call.1} parent=11 // pred_check
          %p457 = pneg %p156
        $region22: #{tpu_custom_call.1} parent=11 // pred_check_branch
          %459 = sbr.rel (%p457) target = $region24
        $region23: #{tpu_custom_call.1} parent=11 // pred_region
          _
        $region24: #{tpu_custom_call.1} parent=11 // pred_fallthru
          _
        // Predicated region
        $region25: #{tpu_custom_call.1} parent=11 // pred_check
          %p460 = pneg %p177
        $region26: #{tpu_custom_call.1} parent=11 // pred_check_branch
          %462 = sbr.rel (%p460) target = $region28
        $region27: #{tpu_custom_call.1} parent=11 // pred_region
          _
        $region28: #{tpu_custom_call.1} parent=11 // pred_fallthru
          _
        // Predicated region
        $region29: #{tpu_custom_call.1} parent=11 // pred_check
          %p463 = pneg %p198
        $region30: #{tpu_custom_call.1} parent=11 // pred_check_branch
          %465 = sbr.rel (%p463) target = $region32
        $region31: #{tpu_custom_call.1} parent=11 // pred_region
          _
        $region32: #{tpu_custom_call.1} parent=11 // pred_fallthru
          _
        // Predicated region
        $region33: #{tpu_custom_call.1} parent=11 // pred_check
          %p466 = pneg %p219
        $region34: #{tpu_custom_call.1} parent=11 // pred_check_branch
          %468 = sbr.rel (%p466) target = $region36
        $region35: #{tpu_custom_call.1} parent=11 // pred_region
          %s470 = ssub.s32 16, 16
          %471 = vsyncadd [#allocation6], %s470
          %s473 = sshll.u32 [#allocation5], 4
          %s474 = int_to_ptr.vmem [resolvable:$true] %s473
          %476 = dma.hbm_to_vmem [thread:$0]  %s7, 16, %s474, [#allocation6]
        $region36: #{tpu_custom_call.1} parent=11 // pred_fallthru
          _
        // Predicated region
        $region37: #{tpu_custom_call.1} parent=11 // pred_check
          %p477 = pneg %p240
        $region38: #{tpu_custom_call.1} parent=11 // pred_check_branch
          %479 = sbr.rel (%p477) target = $region40
        $region39: #{tpu_custom_call.1} parent=11 // pred_region
          _
        $region40: #{tpu_custom_call.1} parent=11 // pred_fallthru
          _
        // Predicated region
        $region41: #{tpu_custom_call.1} parent=11 // pred_check
          %p480 = pneg %p261
        $region42: #{tpu_custom_call.1} parent=11 // pred_check_branch
          %482 = sbr.rel (%p480) target = $region44
        $region43: #{tpu_custom_call.1} parent=11 // pred_region
          _
        $region44: #{tpu_custom_call.1} parent=11 // pred_fallthru
          _
        // Predicated region
        $region45: #{tpu_custom_call.1} parent=11 // pred_check
          %p483 = pneg %p282
        $region46: #{tpu_custom_call.1} parent=11 // pred_check_branch
          %485 = sbr.rel (%p483) target = $region48
        $region47: #{tpu_custom_call.1} parent=11 // pred_region
          _
        $region48: #{tpu_custom_call.1} parent=11 // pred_fallthru
          _
        // Predicated region
        $region49: #{tpu_custom_call.1} parent=11 // pred_check
          %p486 = pneg %p303
        $region50: #{tpu_custom_call.1} parent=11 // pred_check_branch
          %488 = sbr.rel (%p486) target = $region52
        $region51: #{tpu_custom_call.1} parent=11 // pred_region
          _
        $region52: #{tpu_custom_call.1} parent=11 // pred_fallthru
          _
        // Predicated region
        $region53: #{tpu_custom_call.1} parent=11 // pred_check
          %p489 = pneg %p324
        $region54: #{tpu_custom_call.1} parent=11 // pred_check_branch
          %491 = sbr.rel (%p489) target = $region56
        $region55: #{tpu_custom_call.1} parent=11 // pred_region
          _
        $region56: #{tpu_custom_call.1} parent=11 // pred_fallthru
          _
        // Predicated region
        $region57: #{tpu_custom_call.1} parent=11 // pred_check
          %p492 = pneg %p345
        $region58: #{tpu_custom_call.1} parent=11 // pred_check_branch
          %494 = sbr.rel (%p492) target = $region60
        $region59: #{tpu_custom_call.1} parent=11 // pred_region
          _
        $region60: #{tpu_custom_call.1} parent=11 // pred_fallthru
          _
        // Predicated region
        $region61: #{tpu_custom_call.1} parent=11 // pred_check
          %p495 = pneg %p366
        $region62: #{tpu_custom_call.1} parent=11 // pred_check_branch
          %497 = sbr.rel (%p495) target = $region64
        $region63: #{tpu_custom_call.1} parent=11 // pred_region
          _
        $region64: #{tpu_custom_call.1} parent=11 // pred_fallthru
          _
        // Predicated region
        $region65: #{tpu_custom_call.1} parent=11 // pred_check
          %p498 = pneg %p387
        $region66: #{tpu_custom_call.1} parent=11 // pred_check_branch
          %500 = sbr.rel (%p498) target = $region68
        $region67: #{tpu_custom_call.1} parent=11 // pred_region
          _
        $region68: #{tpu_custom_call.1} parent=11 // pred_fallthru
          _
        // Predicated region
        $region69: #{tpu_custom_call.1} parent=11 // pred_check
          %p501 = pneg %p408
        $region70: #{tpu_custom_call.1} parent=11 // pred_check_branch
          %503 = sbr.rel (%p501) target = $region72
        $region71: #{tpu_custom_call.1} parent=11 // pred_region
          _
        $region72: #{tpu_custom_call.1} parent=11 // pred_fallthru
          _
      $region12: #{tpu_custom_call.1} parent=5 // pred_fallthru
        _
      %p504 = scmp.lt.s32.totalorder %s27, 4
      // Predicated region
      $region73: #{tpu_custom_call.1} parent=5 // pred_check
        %p505 = pneg %p504
      $region74: #{tpu_custom_call.1} parent=5 // pred_check_branch
        %507 = sbr.rel (%p505) target = $region76
      $region75: #{tpu_custom_call.1} parent=5 // pred_region
        // Predicated region
        $region77: #{tpu_custom_call.1} parent=75 // pred_check
          %p508 = pneg %p61
        $region78: #{tpu_custom_call.1} parent=75 // pred_check_branch
          %510 = sbr.rel (%p508) target = $region80
        $region79: #{tpu_custom_call.1} parent=75 // pred_region
          %s511 = sand.u32 %s51, 1
          %s512 = sand.u32 %s51, 1
          %s513 = smul.addr %s512, 16
          %s514 = scalar_lea.vmem [#allocation4], %s513
          %s515 = smul.addr %s34, 8
          %s516 = sadd.s32 %s35, %s515
          %s517 = smul.addr %s516, 4
          %s518 = scalar_lea.vmem %s0, %s517
          // Predicated region
          $region81: #{tpu_custom_call.1} parent=79 // pred_check
            _
          $region82: #{tpu_custom_call.1} parent=79 // pred_check_branch
            %520 = sbr.rel (0) target = $region84
          $region83: #{tpu_custom_call.1} parent=79 // pred_region
            // Predicated region
            $region85: #{tpu_custom_call.1} parent=83 // pred_check
              _
            $region86: #{tpu_custom_call.1} parent=83 // pred_check_branch
              %522 = sbr.rel target = $region88
            $region87: #{tpu_custom_call.1} parent=83 // pred_region
              // Predicated region
              $region100: #{tpu_custom_call.1} parent=87 // pred_check
                _
              $region101: #{tpu_custom_call.1} parent=87 // pred_check_branch
                %544 = sbr.rel (0) target = $region103
              $region102: #{tpu_custom_call.1} parent=87 // pred_region
                loop: start=0, step=1, limit=1
                $region104: #{tpu_custom_call.1} parent=102 // loop_pre_header
                  _
                $region105: #{tpu_custom_call.1} parent=102 // loop_header
                  %s546 = sphi 0, %s550
                  %p547 = scmp.ge.s32.totalorder %s546, 1
                  %s551 = sphi %s518, %s518
                  %s552 = sphi %s514, %s514
                $region106: #{tpu_custom_call.1} parent=102 // loop_header_branch
                  %549 = sbr.rel (%p547) target = $region110
                $region107: #{tpu_custom_call.1} parent=102 // loop_body
                  _
                $region108: #{tpu_custom_call.1} parent=102 // loop_footer
                  %s550 = sadd.s32 1, %s546
                $region109: #{tpu_custom_call.1} parent=102 // loop_footer_branch
                  %545 = sbr.rel target = $region105
                $region110: #{tpu_custom_call.1} parent=102 // loop_exit
                  _
                %s554 = ssub.s32 16, 1
                loop: start=0, step=1, limit=1
                $region111: #{tpu_custom_call.1} parent=102 // loop_pre_header
                  _
                $region112: #{tpu_custom_call.1} parent=102 // loop_header
                  %s556 = sphi 0, %s560
                  %p557 = scmp.ge.s32.totalorder %s556, 1
                  %s561 = sphi %s518, %s518
                  %s562 = sphi %s514, %s514
                $region113: #{tpu_custom_call.1} parent=102 // loop_header_branch
                  %559 = sbr.rel (%p557) target = $region117
                $region114: #{tpu_custom_call.1} parent=102 // loop_body
                  %v563 = vld [vmem:[%s561] sm:%s554]
                  %564 = vst [vmem:[%s562] sm:%s554] %v563
                  %v565 = vld [vmem:[%s561 + $0x8] sm:%s554]
                  %566 = vst [vmem:[%s562 + $0x4] sm:%s554] %v565
                  %v567 = vld [vmem:[%s561 + $0x10] sm:%s554]
                  %568 = vst [vmem:[%s562 + $0x8] sm:%s554] %v567
                  %v569 = vld [vmem:[%s561 + $0x18] sm:%s554]
                  %570 = vst [vmem:[%s562 + $0xc] sm:%s554] %v569
                $region115: #{tpu_custom_call.1} parent=102 // loop_footer
                  %s560 = sadd.s32 1, %s556
                $region116: #{tpu_custom_call.1} parent=102 // loop_footer_branch
                  %555 = sbr.rel target = $region112
                $region117: #{tpu_custom_call.1} parent=102 // loop_exit
                  _
              $region103: #{tpu_custom_call.1} parent=87 // pred_fallthru
                _
            $region88: #{tpu_custom_call.1} parent=83 // pred_fallthru
              _
            // Predicated region
            $region89: #{tpu_custom_call.1} parent=83 // pred_check
              _
            $region90: #{tpu_custom_call.1} parent=83 // pred_check_branch
              %524 = sbr.rel (0) target = $region92
            $region91: #{tpu_custom_call.1} parent=83 // pred_region
              %s526 = ssub.s32 16, 1
              loop: start=0, step=1, limit=1
              $region93: #{tpu_custom_call.1} parent=91 // loop_pre_header
                _
              $region94: #{tpu_custom_call.1} parent=91 // loop_header
                %s528 = sphi 0, %s532
                %p529 = scmp.ge.s32.totalorder %s528, 1
                %s533 = sphi %s518, %s518
                %s534 = sphi %s514, %s514
              $region95: #{tpu_custom_call.1} parent=91 // loop_header_branch
                %531 = sbr.rel (%p529) target = $region99
              $region96: #{tpu_custom_call.1} parent=91 // loop_body
                %v535 = vld [vmem:[%s533] sm:%s526]
                %536 = vst [vmem:[%s534] sm:%s526] %v535
                %v537 = vld [vmem:[%s533 + $0x8] sm:%s526]
                %538 = vst [vmem:[%s534 + $0x4] sm:%s526] %v537
                %v539 = vld [vmem:[%s533 + $0x10] sm:%s526]
                %540 = vst [vmem:[%s534 + $0x8] sm:%s526] %v539
                %v541 = vld [vmem:[%s533 + $0x18] sm:%s526]
                %542 = vst [vmem:[%s534 + $0xc] sm:%s526] %v541
              $region97: #{tpu_custom_call.1} parent=91 // loop_footer
                %s532 = sadd.s32 1, %s528
              $region98: #{tpu_custom_call.1} parent=91 // loop_footer_branch
                %527 = sbr.rel target = $region94
              $region99: #{tpu_custom_call.1} parent=91 // loop_exit
                _
            $region92: #{tpu_custom_call.1} parent=83 // pred_fallthru
              _
          $region84: #{tpu_custom_call.1} parent=79 // pred_fallthru
            _
          %571 = vnop
        $region80: #{tpu_custom_call.1} parent=75 // pred_fallthru
          _
        // Predicated region
        $region118: #{tpu_custom_call.1} parent=75 // pred_check
          %p572 = pneg %p87
        $region119: #{tpu_custom_call.1} parent=75 // pred_check_branch
          %574 = sbr.rel (%p572) target = $region121
        $region120: #{tpu_custom_call.1} parent=75 // pred_region
          %p575 = scmp.lt.s32.totalorder %s34, 1
          %s576 = scalar_select %p575, %s34, 1
          %s577 = smul.addr %s576, 4
          %s578 = scalar_lea.vmem %s1, %s577
        $region121: #{tpu_custom_call.1} parent=75 // pred_fallthru
          _
      $region76: #{tpu_custom_call.1} parent=5 // pred_fallthru
        _
      %p579 = scmp.le.s32.totalorder 1, %s27
      %p580 = scmp.lt.s32.totalorder %s27, 5
      %p581 = pnand %p579, %p580
      %p582 = pneg %p581
      // Predicated region
      $region122: #{tpu_custom_call.1} parent=5 // pred_check
        _
      $region123: #{tpu_custom_call.1} parent=5 // pred_check_branch
        %584 = sbr.rel (%p581) target = $region125
      $region124: #{tpu_custom_call.1} parent=5 // pred_region
        %s585 = ssub.s32 %s27, 1
        %s586 = sand.u32 %s54, 1
        %s587 = sand.u32 %s54, 1
        %s588 = smul.addr %s587, 16
        %s589 = scalar_lea.vmem [#allocation4], %s588
        // Predicated region
        $region126: #{tpu_custom_call.1} parent=124 // pred_check
          %p590 = pneg %p67
        $region127: #{tpu_custom_call.1} parent=124 // pred_check_branch
          %592 = sbr.rel (%p590) target = $region129
        $region128: #{tpu_custom_call.1} parent=124 // pred_region
          _
        $region129: #{tpu_custom_call.1} parent=124 // pred_fallthru
          _
        // Predicated region
        $region130: #{tpu_custom_call.1} parent=124 // pred_check
          %p593 = pneg %p219
        $region131: #{tpu_custom_call.1} parent=124 // pred_check_branch
          %595 = sbr.rel (%p593) target = $region133
        $region132: #{tpu_custom_call.1} parent=124 // pred_region
          %596 = dma.done [#allocation6], 16
        $region133: #{tpu_custom_call.1} parent=124 // pred_fallthru
          _
        %s597 = sand.u32 %s54, 1
        %s598 = sand.u32 %s54, 1
        %s599 = smul.addr %s598, 16
        %s600 = scalar_lea.vmem [#allocation4], %s599
        %p601 = pneg %p67
        %p602 = pneg %p64
        %p603 = scmp.lt.s32.totalorder %s36, 1
        %s604 = scalar_select %p603, %s36, 1
        %s605 = smul.addr %s604, 4
        %s606 = scalar_lea.vmem %s1, %s605
        %p607 = pneg %p93
        %p608 = pneg %p90
        %p609 = pneg %p114
        %p610 = pneg %p111
        %p611 = pneg %p135
        %p612 = pneg %p132
        %p613 = pneg %p156
        %p614 = pneg %p153
        %p615 = pneg %p177
        %p616 = pneg %p174
        %p617 = pneg %p198
        %p618 = pneg %p195
        %p619 = pneg %p219
        %p620 = pneg %p216
        %p621 = pneg %p240
        %p622 = pneg %p237
        %p623 = pneg %p261
        %p624 = pneg %p258
        %p625 = pneg %p282
        %p626 = pneg %p279
        %p627 = pneg %p303
        %p628 = pneg %p300
        %p629 = pneg %p324
        %p630 = pneg %p321
        %p631 = pneg %p345
        %p632 = pneg %p342
        %p633 = pneg %p366
        %p634 = pneg %p363
        %p635 = pneg %p387
        %p636 = pneg %p384
        %p637 = pneg %p408
        %p638 = pneg %p405
        %p639 = pneg %p436
        %p640 = pneg %p433
        %s641 = sand.u32 %s423, 1
        %s642 = scalar_lea.sflag [#allocation7], %s641
        %s643 = sand.u32 %s423, 1
        %s644 = smul.addr %s643, 32
        %s645 = scalar_lea.vmem [#allocation8], %s644
        %p646 = scmp.lt.s32.totalorder %s36, 1
        %s647 = scalar_select %p646, %s36, 1
        %s648 = smul.addr %s647, 4
        %s649 = scalar_lea.vmem %s1, %s648
        %v651 = vld [vmem:[%s589] sm:$0xf]
        %v652 = vld [vmem:[%s589 + $0x4] sm:$0xf]
        %v653 = vld [vmem:[%s589 + $0x8] sm:$0xf]
        %v654 = vld [vmem:[%s589 + $0xc] sm:$0xf]
        %p655 = scmp.eq.s32.totalorder %s37, 0
        // Predicated region
        $region134: #{tpu_custom_call.1} parent=124 // pred_check
          %p656 = pneg %p655
        $region135: #{tpu_custom_call.1} parent=124 // pred_check_branch
          %658 = sbr.rel (%p656) target = $region137
        $region136: #{tpu_custom_call.1} parent=124 // pred_region
          %v659 = vld [vmem:[%s649] sm:$0xf]
          %v660 = vld [vmem:[%s6] sm:$0xf]
          %v661 = vld [vmem:[%s6 + $0x4] sm:$0xf]
          %v662 = vld [vmem:[#allocation5] sm:$0x1]
          %v664 = vlaneseq
          %v665 = vshrl.u32 %v664, 7
          %v666 = vsub.s32 0, %v665
          %v667 = vrot.slane %v662, %v666
          %v671 = vunpack.c.l.b16 %v660
          %v672 = vunpack.c.l.b16 %v661
          %v673 = vpack.c.b16 %v672, %v671
          %vm674 = vcmask 261120
          %v676 = vsel %vm674, %v659, 0
          %v679 = vsel %vm674, %v673, 0
          %681 = vmatprep.subr.bf16.mxu0 0
          %682 = vmatpush1.bf16.xpose.msra.mxu0 0
          %683 = vmatprep.subr.bf16.mxu0 0
          %684 = vmatpush1.bf16.xpose.msra.mxu0 0
          %685 = vmatprep.subr.bf16.mxu0 0
          %686 = vmatpush1.bf16.xpose.msra.mxu0 0
          %687 = vmatprep.subr.bf16.mxu0 0
          %688 = vmatpush1.bf16.xpose.msra.mxu0 0
          %689 = vmatprep.subr.bf16.mxu0 0
          %690 = vmatpush1.bf16.xpose.msra.mxu0 0
          %691 = vmatprep.subr.bf16.mxu0 0
          %692 = vmatpush1.bf16.xpose.msra.mxu0 0
          %693 = vmatprep.subr.bf16.mxu0 0
          %694 = vmatpush1.bf16.xpose.msra.mxu0 0
          %695 = vmatprep.subr.bf16.mxu0 0
          %696 = vmatpush1.bf16.xpose.msra.mxu0 %v679
          %697 = vmatprep.subr.bf16.mxu0 0
          %698 = vmatpush2.bf16.xpose.msra.mxu0 0
          %699 = vmatprep.subr.bf16.mxu0 0
          %700 = vmatpush2.bf16.xpose.msra.mxu0 0
          %701 = vmatprep.subr.bf16.mxu0 0
          %702 = vmatpush2.bf16.xpose.msra.mxu0 0
          %703 = vmatprep.subr.bf16.mxu0 0
          %704 = vmatpush2.bf16.xpose.msra.mxu0 0
          %705 = vmatprep.subr.bf16.mxu0 0
          %706 = vmatpush2.bf16.xpose.msra.mxu0 0
          %707 = vmatprep.subr.bf16.mxu0 0
          %708 = vmatpush2.bf16.xpose.msra.mxu0 0
          %709 = vmatprep.subr.bf16.mxu0 0
          %710 = vmatpush2.bf16.xpose.msra.mxu0 0
          %711 = vmatprep.subr.bf16.mxu0 0
          %712 = vmatpush2.bf16.xpose.msra.mxu0 0
          %713 = vmatprep.mubr.bf16.mxu0 0
          %714 = vmatmul.mubr.bf16.gmra.mxu0 %v676
          %v715 = vpop.f32.mrf.mxu0
          %v716 = vadd.f32 %v667, %v715
          %v717 = vpop.f32.mrf.mxu0
          %v718 = vpop.f32.mrf.mxu0
          %v719 = vpop.f32.mrf.mxu0
          %720 = vdwg.mxu0
          %v721 = vmax.f32 %v716, 0.0
          %v722 = vpack.c.bf16 %v721, %v721
          %v723 = vld [vmem:[%s8] sm:$0xf]
          %v724 = vld [vmem:[%s8 + $0x4] sm:$0xf]
          %v725 = vld [vmem:[%s9] sm:$0x1]
          %v727 = vlaneseq
          %v728 = vshrl.u32 %v727, 7
          %v729 = vsub.s32 0, %v728
          %v730 = vrot.slane %v725, %v729
          %v734 = vunpack.c.l.b16 %v723
          %v735 = vunpack.c.l.b16 %v724
          %v736 = vpack.c.b16 %v735, %v734
          %vm737 = vcmask 130048
          %v739 = vsel %vm737, %v722, 0
          %v742 = vsel %vm737, %v736, 0
          %744 = vmatprep.subr.bf16.mxu0 0
          %745 = vmatpush1.bf16.xpose.msra.mxu0 0
          %746 = vmatprep.subr.bf16.mxu0 0
          %747 = vmatpush1.bf16.xpose.msra.mxu0 0
          %748 = vmatprep.subr.bf16.mxu0 0
          %749 = vmatpush1.bf16.xpose.msra.mxu0 0
          %750 = vmatprep.subr.bf16.mxu0 0
          %751 = vmatpush1.bf16.xpose.msra.mxu0 0
          %752 = vmatprep.subr.bf16.mxu0 0
          %753 = vmatpush1.bf16.xpose.msra.mxu0 0
          %754 = vmatprep.subr.bf16.mxu0 0
          %755 = vmatpush1.bf16.xpose.msra.mxu0 0
          %756 = vmatprep.subr.bf16.mxu0 0
          %757 = vmatpush1.bf16.xpose.msra.mxu0 0
          %758 = vmatprep.subr.bf16.mxu0 0
          %759 = vmatpush1.bf16.xpose.msra.mxu0 %v742
          %760 = vmatprep.subr.bf16.mxu0 0
          %761 = vmatpush2.bf16.xpose.msra.mxu0 0
          %762 = vmatprep.subr.bf16.mxu0 0
          %763 = vmatpush2.bf16.xpose.msra.mxu0 0
          %764 = vmatprep.subr.bf16.mxu0 0
          %765 = vmatpush2.bf16.xpose.msra.mxu0 0
          %766 = vmatprep.subr.bf16.mxu0 0
          %767 = vmatpush2.bf16.xpose.msra.mxu0 0
          %768 = vmatprep.subr.bf16.mxu0 0
          %769 = vmatpush2.bf16.xpose.msra.mxu0 0
          %770 = vmatprep.subr.bf16.mxu0 0
          %771 = vmatpush2.bf16.xpose.msra.mxu0 0
          %772 = vmatprep.subr.bf16.mxu0 0
          %773 = vmatpush2.bf16.xpose.msra.mxu0 0
          %774 = vmatprep.subr.bf16.mxu0 0
          %775 = vmatpush2.bf16.xpose.msra.mxu0 0
          %776 = vmatprep.mubr.bf16.mxu0 0
          %777 = vmatmul.mubr.bf16.gmra.mxu0 %v739
          %v778 = vpop.f32.mrf.mxu0
          %v779 = vadd.f32 %v730, %v778
          %v780 = vpop.f32.mrf.mxu0
          %v781 = vpop.f32.mrf.mxu0
          %v782 = vpop.f32.mrf.mxu0
          %783 = vdwg.mxu0
          %v784 = vmax.f32 %v779, 0.0
          %785 = vst.msk [vmem:[#allocation2] sm:$0xff] %vm737, %v784
          %v786 = vld [vmem:[%s10] sm:$0xf]
          %v787 = vld [vmem:[%s10 + $0x4] sm:$0xf]
          %v788 = vld [vmem:[%s11] sm:$0xff]
          %v789 = vld [vmem:[%s11 + $0x8] sm:$0xff]
          %791 = vset.pattern.permute.xlu0 0
          %792 = vperm.xlu0 %791, %v788
          %v793 = vpop.permute.xlu0 %792
          %796 = vset.pattern.permute.xlu0 0
          %797 = vperm.xlu0 %796, %v789
          %v798 = vpop.permute.xlu0 %797
          %v802 = vunpack.c.l.b16 %v786
          %v803 = vunpack.c.l.b16 %v787
          %v804 = vpack.c.b16 %v803, %v802
          %v806 = vsel %vm674, %v804, 0
          %808 = vmatprep.subr.bf16.mxu0 0
          %809 = vmatpush1.bf16.xpose.msra.mxu0 0
          %810 = vmatprep.subr.bf16.mxu0 0
          %811 = vmatpush1.bf16.xpose.msra.mxu0 0
          %812 = vmatprep.subr.bf16.mxu0 0
          %813 = vmatpush1.bf16.xpose.msra.mxu0 0
          %814 = vmatprep.subr.bf16.mxu0 0
          %815 = vmatpush1.bf16.xpose.msra.mxu0 0
          %816 = vmatprep.subr.bf16.mxu0 0
          %817 = vmatpush1.bf16.xpose.msra.mxu0 0
          %818 = vmatprep.subr.bf16.mxu0 0
          %819 = vmatpush1.bf16.xpose.msra.mxu0 0
          %820 = vmatprep.subr.bf16.mxu0 0
          %821 = vmatpush1.bf16.xpose.msra.mxu0 0
          %822 = vmatprep.subr.bf16.mxu0 0
          %823 = vmatpush1.bf16.xpose.msra.mxu0 %v676
          %824 = vmatprep.subr.bf16.mxu0 0
          %825 = vmatpush2.bf16.xpose.msra.mxu0 0
          %826 = vmatprep.subr.bf16.mxu0 0
          %827 = vmatpush2.bf16.xpose.msra.mxu0 0
          %828 = vmatprep.subr.bf16.mxu0 0
          %829 = vmatpush2.bf16.xpose.msra.mxu0 0
          %830 = vmatprep.subr.bf16.mxu0 0
          %831 = vmatpush2.bf16.xpose.msra.mxu0 0
          %832 = vmatprep.subr.bf16.mxu0 0
          %833 = vmatpush2.bf16.xpose.msra.mxu0 0
          %834 = vmatprep.subr.bf16.mxu0 0
          %835 = vmatpush2.bf16.xpose.msra.mxu0 0
          %836 = vmatprep.subr.bf16.mxu0 0
          %837 = vmatpush2.bf16.xpose.msra.mxu0 0
          %838 = vmatprep.subr.bf16.mxu0 0
          %839 = vmatpush2.bf16.xpose.msra.mxu0 0
          %840 = vmatprep.mubr.bf16.mxu0 0
          %841 = vmatmul.mubr.bf16.gmra.mxu0 %v806
          %v842 = vpop.f32.mrf.mxu0
          %v843 = vadd.f32 %v793, %v842
          %v844 = vpop.f32.mrf.mxu0
          %v845 = vpop.f32.mrf.mxu0
          %v846 = vadd.f32 %v798, %v845
          %v847 = vpop.f32.mrf.mxu0
          %848 = vdwg.mxu0
          %v849 = vmax.f32 %v843, 0.0
          %v850 = vmax.f32 %v846, 0.0
          %vm851 = vcmask 64512
          %852 = vst.msk [vmem:[#allocation3] sm:$0xff] %vm851, %v849
          %853 = vst.msk [vmem:[#allocation3 + $0x8] sm:$0xff] %vm851, %v850
        $region137: #{tpu_custom_call.1} parent=124 // pred_fallthru
          _
        %v854 = vld [vmem:[%s2] sm:$0xf]
        %v855 = vld [vmem:[%s2 + $0x4] sm:$0xf]
        %v856 = vld [vmem:[%s3] sm:$0xff]
        %v857 = vld [vmem:[%s3 + $0x8] sm:$0xff]
        %859 = vset.pattern.permute.xlu0 0
        %860 = vperm.xlu0 %859, %v856
        %v861 = vpop.permute.xlu0 %860
        %864 = vset.pattern.permute.xlu0 0
        %865 = vperm.xlu0 %864, %v857
        %v866 = vpop.permute.xlu0 %865
        %v870 = vunpack.c.l.b16 %v854
        %v871 = vunpack.c.l.b16 %v855
        %v872 = vpack.c.b16 %v871, %v870
        %v877 = vunpack.c.l.b16 %v651
        %v878 = vunpack.c.l.b16 %v652
        %v879 = vunpack.c.l.b16 %v653
        %v880 = vunpack.c.l.b16 %v654
        %v881 = vpack.c.b16 %v878, %v877
        %v882 = vpack.c.b16 %v880, %v879
        %vm885 = vcmask 261120
        %v887 = vsel %vm885, %v872, 0
        %889 = vmatprep.subr.bf16.mxu0 0
        %890 = vmatpush1.bf16.msra.mxu0 0
        %891 = vmatprep.subr.bf16.mxu0 0
        %892 = vmatpush1.bf16.msra.mxu0 0
        %893 = vmatprep.subr.bf16.mxu0 0
        %894 = vmatpush1.bf16.msra.mxu0 0
        %895 = vmatprep.subr.bf16.mxu0 0
        %896 = vmatpush1.bf16.msra.mxu0 0
        %897 = vmatprep.subr.bf16.mxu0 0
        %898 = vmatpush1.bf16.msra.mxu0 0
        %899 = vmatprep.subr.bf16.mxu0 0
        %900 = vmatpush1.bf16.msra.mxu0 0
        %901 = vmatprep.subr.bf16.mxu0 0
        %902 = vmatpush1.bf16.msra.mxu0 %v882
        %903 = vmatprep.subr.bf16.mxu0 0
        %904 = vmatpush1.bf16.msra.mxu0 %v881
        %905 = vmatprep.subr.bf16.mxu0 0
        %906 = vmatpush2.bf16.msra.mxu0 0
        %907 = vmatprep.subr.bf16.mxu0 0
        %908 = vmatpush2.bf16.msra.mxu0 0
        %909 = vmatprep.subr.bf16.mxu0 0
        %910 = vmatpush2.bf16.msra.mxu0 0
        %911 = vmatprep.subr.bf16.mxu0 0
        %912 = vmatpush2.bf16.msra.mxu0 0
        %913 = vmatprep.subr.bf16.mxu0 0
        %914 = vmatpush2.bf16.msra.mxu0 0
        %915 = vmatprep.subr.bf16.mxu0 0
        %916 = vmatpush2.bf16.msra.mxu0 0
        %917 = vmatprep.subr.bf16.mxu0 0
        %918 = vmatpush2.bf16.msra.mxu0 0
        %919 = vmatprep.subr.bf16.mxu0 0
        %920 = vmatpush2.bf16.msra.mxu0 0
        %921 = vmatprep.mubr.bf16.mxu0 0
        %922 = vmatmul.mubr.bf16.gmra.mxu0 %v887
        %v923 = vpop.f32.mrf.mxu0
        %v924 = vadd.f32 %v861, %v923
        %v925 = vpop.f32.mrf.mxu0
        %v926 = vpop.f32.mrf.mxu0
        %v927 = vadd.f32 %v866, %v926
        %v928 = vpop.f32.mrf.mxu0
        %929 = vdwg.mxu0
        %v930 = vmax.f32 %v924, 0.0
        %v931 = vmax.f32 %v927, 0.0
        %v932 = vld [vmem:[%s4] sm:$0xf]
        %v933 = vld [vmem:[%s4 + $0x4] sm:$0xf]
        %v934 = vpack.c.bf16 %v931, %v930
        %v935 = vld [vmem:[%s5] sm:$0xff]
        %v936 = vld [vmem:[%s5 + $0x8] sm:$0xff]
        %938 = vset.pattern.permute.xlu0 0
        %939 = vperm.xlu0 %938, %v935
        %v940 = vpop.permute.xlu0 %939
        %943 = vset.pattern.permute.xlu0 0
        %944 = vperm.xlu0 %943, %v936
        %v945 = vpop.permute.xlu0 %944
        %v949 = vunpack.c.l.b16 %v932
        %v950 = vunpack.c.l.b16 %v933
        %v951 = vpack.c.b16 %v950, %v949
        %vm952 = vcmask 130048
        %v954 = vsel %vm952, %v951, 0
        %956 = vmatprep.subr.bf16.mxu0 0
        %957 = vmatpush1.bf16.msra.mxu0 0
        %958 = vmatprep.subr.bf16.mxu0 0
        %959 = vmatpush1.bf16.msra.mxu0 0
        %960 = vmatprep.subr.bf16.mxu0 0
        %961 = vmatpush1.bf16.msra.mxu0 0
        %962 = vmatprep.subr.bf16.mxu0 0
        %963 = vmatpush1.bf16.msra.mxu0 0
        %964 = vmatprep.subr.bf16.mxu0 0
        %965 = vmatpush1.bf16.msra.mxu0 0
        %966 = vmatprep.subr.bf16.mxu0 0
        %967 = vmatpush1.bf16.msra.mxu0 0
        %968 = vmatprep.subr.bf16.mxu0 0
        %969 = vmatpush1.bf16.msra.mxu0 0
        %970 = vmatprep.subr.bf16.mxu0 0
        %971 = vmatpush1.bf16.msra.mxu0 %v934
        %972 = vmatprep.subr.bf16.mxu0 0
        %973 = vmatpush2.bf16.msra.mxu0 0
        %974 = vmatprep.subr.bf16.mxu0 0
        %975 = vmatpush2.bf16.msra.mxu0 0
        %976 = vmatprep.subr.bf16.mxu0 0
        %977 = vmatpush2.bf16.msra.mxu0 0
        %978 = vmatprep.subr.bf16.mxu0 0
        %979 = vmatpush2.bf16.msra.mxu0 0
        %980 = vmatprep.subr.bf16.mxu0 0
        %981 = vmatpush2.bf16.msra.mxu0 0
        %982 = vmatprep.subr.bf16.mxu0 0
        %983 = vmatpush2.bf16.msra.mxu0 0
        %984 = vmatprep.subr.bf16.mxu0 0
        %985 = vmatpush2.bf16.msra.mxu0 0
        %986 = vmatprep.subr.bf16.mxu0 0
        %987 = vmatpush2.bf16.msra.mxu0 0
        %988 = vmatprep.mubr.bf16.mxu0 0
        %989 = vmatmul.mubr.bf16.gmra.mxu0 %v954
        %v990 = vpop.f32.mrf.mxu0
        %v991 = vadd.f32 %v940, %v990
        %v992 = vpop.f32.mrf.mxu0
        %v993 = vpop.f32.mrf.mxu0
        %v994 = vadd.f32 %v945, %v993
        %v995 = vpop.f32.mrf.mxu0
        %996 = vdwg.mxu0
        %v997 = vmax.f32 %v991, 0.0
        %v998 = vmax.f32 %v994, 0.0
        %v999 = vld [vmem:[#allocation2] sm:$0xff]
        %v1000 = vpack.c.bf16 %v999, %v999
        %v1001 = vpack.c.bf16 %v998, %v997
        %v1003 = vsel %vm952, %v1000, 0
        %1005 = vmatprep.subr.bf16.mxu0 0
        %1006 = vmatpush1.bf16.msra.mxu0 0
        %1007 = vmatprep.subr.bf16.mxu0 0
        %1008 = vmatpush1.bf16.msra.mxu0 0
        %1009 = vmatprep.subr.bf16.mxu0 0
        %1010 = vmatpush1.bf16.msra.mxu0 0
        %1011 = vmatprep.subr.bf16.mxu0 0
        %1012 = vmatpush1.bf16.msra.mxu0 0
        %1013 = vmatprep.subr.bf16.mxu0 0
        %1014 = vmatpush1.bf16.msra.mxu0 0
        %1015 = vmatprep.subr.bf16.mxu0 0
        %1016 = vmatpush1.bf16.msra.mxu0 0
        %1017 = vmatprep.subr.bf16.mxu0 0
        %1018 = vmatpush1.bf16.msra.mxu0 0
        %1019 = vmatprep.subr.bf16.mxu0 0
        %1020 = vmatpush1.bf16.msra.mxu0 %v1001
        %1021 = vmatprep.subr.bf16.mxu0 0
        %1022 = vmatpush2.bf16.msra.mxu0 0
        %1023 = vmatprep.subr.bf16.mxu0 0
        %1024 = vmatpush2.bf16.msra.mxu0 0
        %1025 = vmatprep.subr.bf16.mxu0 0
        %1026 = vmatpush2.bf16.msra.mxu0 0
        %1027 = vmatprep.subr.bf16.mxu0 0
        %1028 = vmatpush2.bf16.msra.mxu0 0
        %1029 = vmatprep.subr.bf16.mxu0 0
        %1030 = vmatpush2.bf16.msra.mxu0 0
        %1031 = vmatprep.subr.bf16.mxu0 0
        %1032 = vmatpush2.bf16.msra.mxu0 0
        %1033 = vmatprep.subr.bf16.mxu0 0
        %1034 = vmatpush2.bf16.msra.mxu0 0
        %1035 = vmatprep.subr.bf16.mxu0 0
        %1036 = vmatpush2.bf16.msra.mxu0 0
        %1037 = vmatprep.mubr.bf16.mxu0 0
        %1038 = vmatmul.mubr.bf16.gmra.mxu0 %v1003
        %v1039 = vpop.f32.mrf.mxu0
        %v1040 = vadd.f32 0.0, %v1039
        %v1041 = vpop.f32.mrf.mxu0
        %v1042 = vpop.f32.mrf.mxu0
        %v1043 = vpop.f32.mrf.mxu0
        %1044 = vdwg.mxu0
        %v1045 = vrot.slane %v1040, 4
        %v1046 = vmax.f32 %v1040, %v1045
        %v1047 = vrot.slane %v1046, 2
        %v1048 = vmax.f32 %v1046, %v1047
        %v1049 = vrot.slane %v1048, 1
        %v1050 = vmax.f32 %v1048, %v1049
        %v1051 = vsub.f32 %v1040, %v1050
        %v1052 = vmul.f32 %v1051, 1.442695
        %v1053 = vpow.pop %v1052
        %v1054 = vrot.slane %v1053, 4
        %v1055 = vadd.f32 %v1053, %v1054
        %v1056 = vrot.slane %v1055, 2
        %v1057 = vadd.f32 %v1055, %v1056
        %v1058 = vrot.slane %v1057, 1
        %v1059 = vadd.f32 %v1057, %v1058
        %v1060 = vrcp.pop %v1059
        %v1061 = vmul.f32 %v1053, %v1060
        %v1062 = vld [vmem:[#allocation3] sm:$0xff]
        %v1063 = vld [vmem:[#allocation3 + $0x8] sm:$0xff]
        %v1064 = vpack.c.bf16 %v1063, %v1062
        %v1065 = vpack.c.bf16 %v1061, %v1061
        %vm1066 = vcmask 64512
        %v1068 = vsel %vm1066, %v1064, 0
        %vm1070 = vcmask 1043456
        %v1072 = vsel %vm1070, %v1065, 0
        %1074 = vmatprep.subr.bf16.mxu0 0
        %1075 = vmatpush1.bf16.msra.mxu0 0
        %1076 = vmatprep.subr.bf16.mxu0 0
        %1077 = vmatpush1.bf16.msra.mxu0 0
        %1078 = vmatprep.subr.bf16.mxu0 0
        %1079 = vmatpush1.bf16.msra.mxu0 0
        %1080 = vmatprep.subr.bf16.mxu0 0
        %1081 = vmatpush1.bf16.msra.mxu0 0
        %1082 = vmatprep.subr.bf16.mxu0 0
        %1083 = vmatpush1.bf16.msra.mxu0 0
        %1084 = vmatprep.subr.bf16.mxu0 0
        %1085 = vmatpush1.bf16.msra.mxu0 0
        %1086 = vmatprep.subr.bf16.mxu0 0
        %1087 = vmatpush1.bf16.msra.mxu0 0
        %1088 = vmatprep.subr.bf16.mxu0 0
        %1089 = vmatpush1.bf16.msra.mxu0 %v1072
        %1090 = vmatprep.subr.bf16.mxu0 0
        %1091 = vmatpush2.bf16.msra.mxu0 0
        %1092 = vmatprep.subr.bf16.mxu0 0
        %1093 = vmatpush2.bf16.msra.mxu0 0
        %1094 = vmatprep.subr.bf16.mxu0 0
        %1095 = vmatpush2.bf16.msra.mxu0 0
        %1096 = vmatprep.subr.bf16.mxu0 0
        %1097 = vmatpush2.bf16.msra.mxu0 0
        %1098 = vmatprep.subr.bf16.mxu0 0
        %1099 = vmatpush2.bf16.msra.mxu0 0
        %1100 = vmatprep.subr.bf16.mxu0 0
        %1101 = vmatpush2.bf16.msra.mxu0 0
        %1102 = vmatprep.subr.bf16.mxu0 0
        %1103 = vmatpush2.bf16.msra.mxu0 0
        %1104 = vmatprep.subr.bf16.mxu0 0
        %1105 = vmatpush2.bf16.msra.mxu0 0
        %1106 = vmatprep.mubr.bf16.mxu0 0
        %1107 = vmatmul.mubr.bf16.gmra.mxu0 %v1068
        %v1108 = vpop.f32.mrf.mxu0
        %v1109 = vadd.f32 0.0, %v1108
        %v1110 = vpop.f32.mrf.mxu0
        %v1111 = vpop.f32.mrf.mxu0
        %v1112 = vadd.f32 0.0, %v1111
        %v1113 = vpop.f32.mrf.mxu0
        %1114 = vdwg.mxu0
        %v1115 = vld [vmem:[%s12] sm:$0xf]
        %v1116 = vld [vmem:[%s12 + $0x4] sm:$0xf]
        %v1117 = vld [vmem:[%s12 + $0x8] sm:$0xf]
        %v1118 = vld [vmem:[%s12 + $0xc] sm:$0xf]
        %v1119 = vpack.c.bf16 %v1112, %v1109
        %v1120 = vld [vmem:[%s13] sm:$0xff]
        %v1121 = vld [vmem:[%s13 + $0x8] sm:$0xff]
        %v1122 = vld [vmem:[%s13 + $0x10] sm:$0xff]
        %v1123 = vld [vmem:[%s13 + $0x18] sm:$0xff]
        %1125 = vset.pattern.permute.xlu0 0
        %1126 = vperm.xlu0 %1125, %v1120
        %v1127 = vpop.permute.xlu0 %1126
        %1130 = vset.pattern.permute.xlu0 0
        %1131 = vperm.xlu0 %1130, %v1121
        %v1132 = vpop.permute.xlu0 %1131
        %1135 = vset.pattern.permute.xlu0 0
        %1136 = vperm.xlu0 %1135, %v1122
        %v1137 = vpop.permute.xlu0 %1136
        %1140 = vset.pattern.permute.xlu0 0
        %1141 = vperm.xlu0 %1140, %v1123
        %v1142 = vpop.permute.xlu0 %1141
        %v1148 = vunpack.c.l.b16 %v1115
        %v1149 = vunpack.c.l.b16 %v1116
        %v1150 = vunpack.c.l.b16 %v1117
        %v1151 = vunpack.c.l.b16 %v1118
        %v1152 = vpack.c.b16 %v1149, %v1148
        %v1153 = vpack.c.b16 %v1151, %v1150
        %v1155 = vsel %vm952, %v1152, 0
        %v1158 = vsel %vm952, %v1153, 0
        %1160 = vmatprep.subr.bf16.mxu0 0
        %1161 = vmatpush1.bf16.msra.mxu0 0
        %1162 = vmatprep.subr.bf16.mxu0 0
        %1163 = vmatpush1.bf16.msra.mxu0 0
        %1164 = vmatprep.subr.bf16.mxu0 0
        %1165 = vmatpush1.bf16.msra.mxu0 0
        %1166 = vmatprep.subr.bf16.mxu0 0
        %1167 = vmatpush1.bf16.msra.mxu0 0
        %1168 = vmatprep.subr.bf16.mxu0 0
        %1169 = vmatpush1.bf16.msra.mxu0 0
        %1170 = vmatprep.subr.bf16.mxu0 0
        %1171 = vmatpush1.bf16.msra.mxu0 0
        %1172 = vmatprep.subr.bf16.mxu0 0
        %1173 = vmatpush1.bf16.msra.mxu0 0
        %1174 = vmatprep.subr.bf16.mxu0 0
        %1175 = vmatpush1.bf16.msra.mxu0 %v1119
        %1176 = vmatprep.subr.bf16.mxu0 0
        %1177 = vmatpush2.bf16.msra.mxu0 0
        %1178 = vmatprep.subr.bf16.mxu0 0
        %1179 = vmatpush2.bf16.msra.mxu0 0
        %1180 = vmatprep.subr.bf16.mxu0 0
        %1181 = vmatpush2.bf16.msra.mxu0 0
        %1182 = vmatprep.subr.bf16.mxu0 0
        %1183 = vmatpush2.bf16.msra.mxu0 0
        %1184 = vmatprep.subr.bf16.mxu0 0
        %1185 = vmatpush2.bf16.msra.mxu0 0
        %1186 = vmatprep.subr.bf16.mxu0 0
        %1187 = vmatpush2.bf16.msra.mxu0 0
        %1188 = vmatprep.subr.bf16.mxu0 0
        %1189 = vmatpush2.bf16.msra.mxu0 0
        %1190 = vmatprep.subr.bf16.mxu0 0
        %1191 = vmatpush2.bf16.msra.mxu0 0
        %1192 = vmatprep.mubr.bf16.mxu0 0
        %1193 = vmatmul.mubr.bf16.gmra.mxu0 %v1155
        %v1194 = vpop.f32.mrf.mxu0
        %v1195 = vadd.f32 %v1127, %v1194
        %v1196 = vpop.f32.mrf.mxu0
        %v1197 = vpop.f32.mrf.mxu0
        %v1198 = vadd.f32 %v1132, %v1197
        %v1199 = vpop.f32.mrf.mxu0
        %1200 = vmatprep.mubr.bf16.mxu0 0
        %1201 = vmatmul.mubr.bf16.gmra.mxu0 %v1158
        %v1202 = vpop.f32.mrf.mxu0
        %v1203 = vadd.f32 %v1137, %v1202
        %v1204 = vpop.f32.mrf.mxu0
        %v1205 = vpop.f32.mrf.mxu0
        %v1206 = vadd.f32 %v1142, %v1205
        %v1207 = vpop.f32.mrf.mxu0
        %1208 = vdwg.mxu0
        %v1209 = vmax.f32 %v1195, 0.0
        %v1210 = vmax.f32 %v1198, 0.0
        %v1211 = vmax.f32 %v1203, 0.0
        %v1212 = vmax.f32 %v1206, 0.0
        %v1213 = vld [vmem:[%s14] sm:$0xf]
        %v1214 = vld [vmem:[%s14 + $0x4] sm:$0xf]
        %v1215 = vld [vmem:[%s14 + $0x8] sm:$0xf]
        %v1216 = vld [vmem:[%s14 + $0xc] sm:$0xf]
        %v1217 = vpack.c.bf16 %v1210, %v1209
        %v1218 = vpack.c.bf16 %v1212, %v1211
        %v1219 = vld [vmem:[%s15] sm:$0xf]
        %v1220 = vld [vmem:[%s15 + $0x4] sm:$0xf]
        %v1221 = vld [vmem:[%s15 + $0x8] sm:$0xf]
        %v1222 = vld [vmem:[%s15 + $0xc] sm:$0xf]
        %v1227 = vunpack.c.l.b16 %v1219
        %v1228 = vunpack.c.l.b16 %v1220
        %v1229 = vunpack.c.l.b16 %v1221
        %v1230 = vunpack.c.l.b16 %v1222
        %v1231 = vpack.c.b16 %v1228, %v1227
        %v1232 = vpack.c.b16 %v1230, %v1229
        %v1234 = vsel %vm885, %v1231, 0
        %v1237 = vsel %vm885, %v1232, 0
        %1239 = vmatprep.subr.bf16.mxu0 0
        %1240 = vmatpush1.bf16.msra.mxu0 0
        %1241 = vmatprep.subr.bf16.mxu0 0
        %1242 = vmatpush1.bf16.msra.mxu0 0
        %1243 = vmatprep.subr.bf16.mxu0 0
        %1244 = vmatpush1.bf16.msra.mxu0 0
        %1245 = vmatprep.subr.bf16.mxu0 0
        %1246 = vmatpush1.bf16.msra.mxu0 0
        %1247 = vmatprep.subr.bf16.mxu0 0
        %1248 = vmatpush1.bf16.msra.mxu0 0
        %1249 = vmatprep.subr.bf16.mxu0 0
        %1250 = vmatpush1.bf16.msra.mxu0 0
        %1251 = vmatprep.subr.bf16.mxu0 0
        %1252 = vmatpush1.bf16.msra.mxu0 %v882
        %1253 = vmatprep.subr.bf16.mxu0 0
        %1254 = vmatpush1.bf16.msra.mxu0 %v881
        %1255 = vmatprep.subr.bf16.mxu0 0
        %1256 = vmatpush2.bf16.msra.mxu0 0
        %1257 = vmatprep.subr.bf16.mxu0 0
        %1258 = vmatpush2.bf16.msra.mxu0 0
        %1259 = vmatprep.subr.bf16.mxu0 0
        %1260 = vmatpush2.bf16.msra.mxu0 0
        %1261 = vmatprep.subr.bf16.mxu0 0
        %1262 = vmatpush2.bf16.msra.mxu0 0
        %1263 = vmatprep.subr.bf16.mxu0 0
        %1264 = vmatpush2.bf16.msra.mxu0 0
        %1265 = vmatprep.subr.bf16.mxu0 0
        %1266 = vmatpush2.bf16.msra.mxu0 0
        %1267 = vmatprep.subr.bf16.mxu0 0
        %1268 = vmatpush2.bf16.msra.mxu0 0
        %1269 = vmatprep.subr.bf16.mxu0 0
        %1270 = vmatpush2.bf16.msra.mxu0 0
        %1271 = vmatprep.mubr.bf16.mxu0 0
        %1272 = vmatmul.mubr.bf16.gmra.mxu0 %v1234
        %v1273 = vpop.f32.mrf.mxu0
        %v1274 = vadd.f32 0.0, %v1273
        %v1275 = vpop.f32.mrf.mxu0
        %v1276 = vpop.f32.mrf.mxu0
        %v1277 = vadd.f32 0.0, %v1276
        %v1278 = vpop.f32.mrf.mxu0
        %1279 = vmatprep.mubr.bf16.mxu0 0
        %1280 = vmatmul.mubr.bf16.gmra.mxu0 %v1237
        %v1281 = vpop.f32.mrf.mxu0
        %v1282 = vadd.f32 0.0, %v1281
        %v1283 = vpop.f32.mrf.mxu0
        %v1284 = vpop.f32.mrf.mxu0
        %v1285 = vadd.f32 0.0, %v1284
        %v1286 = vpop.f32.mrf.mxu0
        %1287 = vdwg.mxu0
        %v1292 = vunpack.c.l.b16 %v1213
        %v1293 = vunpack.c.l.b16 %v1214
        %v1294 = vunpack.c.l.b16 %v1215
        %v1295 = vunpack.c.l.b16 %v1216
        %v1296 = vpack.c.b16 %v1293, %v1292
        %v1297 = vpack.c.b16 %v1295, %v1294
        %v1299 = vsel %vm885, %v1296, 0
        %v1302 = vsel %vm885, %v1297, 0
        %1304 = vmatprep.subr.bf16.mxu0 0
        %1305 = vmatpush1.bf16.msra.mxu0 0
        %1306 = vmatprep.subr.bf16.mxu0 0
        %1307 = vmatpush1.bf16.msra.mxu0 0
        %1308 = vmatprep.subr.bf16.mxu0 0
        %1309 = vmatpush1.bf16.msra.mxu0 0
        %1310 = vmatprep.subr.bf16.mxu0 0
        %1311 = vmatpush1.bf16.msra.mxu0 0
        %1312 = vmatprep.subr.bf16.mxu0 0
        %1313 = vmatpush1.bf16.msra.mxu0 0
        %1314 = vmatprep.subr.bf16.mxu0 0
        %1315 = vmatpush1.bf16.msra.mxu0 0
        %1316 = vmatprep.subr.bf16.mxu0 0
        %1317 = vmatpush1.bf16.msra.mxu0 %v1218
        %1318 = vmatprep.subr.bf16.mxu0 0
        %1319 = vmatpush1.bf16.msra.mxu0 %v1217
        %1320 = vmatprep.subr.bf16.mxu0 0
        %1321 = vmatpush2.bf16.msra.mxu0 0
        %1322 = vmatprep.subr.bf16.mxu0 0
        %1323 = vmatpush2.bf16.msra.mxu0 0
        %1324 = vmatprep.subr.bf16.mxu0 0
        %1325 = vmatpush2.bf16.msra.mxu0 0
        %1326 = vmatprep.subr.bf16.mxu0 0
        %1327 = vmatpush2.bf16.msra.mxu0 0
        %1328 = vmatprep.subr.bf16.mxu0 0
        %1329 = vmatpush2.bf16.msra.mxu0 0
        %1330 = vmatprep.subr.bf16.mxu0 0
        %1331 = vmatpush2.bf16.msra.mxu0 0
        %1332 = vmatprep.subr.bf16.mxu0 0
        %1333 = vmatpush2.bf16.msra.mxu0 0
        %1334 = vmatprep.subr.bf16.mxu0 0
        %1335 = vmatpush2.bf16.msra.mxu0 0
        %1336 = vmatprep.mubr.bf16.mxu0 0
        %1337 = vmatmul.mubr.bf16.gmra.mxu0 %v1299
        %v1338 = vpop.f32.mrf.mxu0
        %v1339 = vadd.f32 %v1274, %v1338
        %v1340 = vpop.f32.mrf.mxu0
        %v1341 = vpop.f32.mrf.mxu0
        %v1342 = vadd.f32 %v1277, %v1341
        %v1343 = vpop.f32.mrf.mxu0
        %1344 = vmatprep.mubr.bf16.mxu0 0
        %1345 = vmatmul.mubr.bf16.gmra.mxu0 %v1302
        %v1346 = vpop.f32.mrf.mxu0
        %v1347 = vadd.f32 %v1282, %v1346
        %v1348 = vpop.f32.mrf.mxu0
        %v1349 = vpop.f32.mrf.mxu0
        %v1350 = vadd.f32 %v1285, %v1349
        %v1351 = vpop.f32.mrf.mxu0
        %1352 = vdwg.mxu0
        %v1353 = vld [vmem:[%s16] sm:$0xff]
        %v1354 = vld [vmem:[%s16 + $0x8] sm:$0xff]
        %v1355 = vld [vmem:[%s16 + $0x10] sm:$0xff]
        %v1356 = vld [vmem:[%s16 + $0x18] sm:$0xff]
        %1358 = vset.pattern.permute.xlu0 0
        %1359 = vperm.xlu0 %1358, %v1353
        %v1360 = vpop.permute.xlu0 %1359
        %1363 = vset.pattern.permute.xlu0 0
        %1364 = vperm.xlu0 %1363, %v1354
        %v1365 = vpop.permute.xlu0 %1364
        %1368 = vset.pattern.permute.xlu0 0
        %1369 = vperm.xlu0 %1368, %v1355
        %v1370 = vpop.permute.xlu0 %1369
        %1373 = vset.pattern.permute.xlu0 0
        %1374 = vperm.xlu0 %1373, %v1356
        %v1375 = vpop.permute.xlu0 %1374
        %v1377 = vadd.f32 %v1339, %v1360
        %v1378 = vadd.f32 %v1342, %v1365
        %v1379 = vadd.f32 %v1347, %v1370
        %v1380 = vadd.f32 %v1350, %v1375
        %v1381 = vmax.f32 %v1377, 0.0
        %v1382 = vmax.f32 %v1378, 0.0
        %v1383 = vmax.f32 %v1379, 0.0
        %v1384 = vmax.f32 %v1380, 0.0
        %1385 = vst [vmem:[%s645] sm:$0xff] %v1381
        %1386 = vst [vmem:[%s645 + $0x8] sm:$0xff] %v1382
        %1387 = vst [vmem:[%s645 + $0x10] sm:$0xff] %v1383
        %1388 = vst [vmem:[%s645 + $0x18] sm:$0xff] %v1384
        %s1389 = sand.u32 %s423, 1
        %s1390 = scalar_lea.sflag [#allocation7], %s1389
        %s1391 = sand.u32 %s423, 1
        %s1392 = smul.addr %s1391, 32
        %s1393 = scalar_lea.vmem [#allocation8], %s1392
        // Predicated region
        $region138: #{tpu_custom_call.1} parent=124 // pred_check
          %p1394 = pneg %p433
        $region139: #{tpu_custom_call.1} parent=124 // pred_check_branch
          %1396 = sbr.rel (%p1394) target = $region141
        $region140: #{tpu_custom_call.1} parent=124 // pred_region
          %s1398 = ssub.s32 512, 512
          %1399 = vsyncadd %s1390, %s1398
          %s1400 = smul.addr %s36, 8
          %s1401 = sadd.s32 %s37, %s1400
          %s1402 = smul.addr %s1401, 128
          %s1403 = scalar_lea.hbm %s17, %s1402
          %s1404 = sshll.u32 %s1393, 4
          %s1405 = int_to_ptr.vmem [resolvable:$true] %s1404
          %1410 = dma.vmem_to_hbm [thread:$0]  %s1405, 512, %s1403, %s1390, 128, 256, 8
        $region141: #{tpu_custom_call.1} parent=124 // pred_fallthru
          _
      $region125: #{tpu_custom_call.1} parent=5 // pred_fallthru
        _
      %p1411 = scmp.le.s32.totalorder 2, %s27
      // Predicated region
      $region142: #{tpu_custom_call.1} parent=5 // pred_check
        %p1412 = pneg %p1411
      $region143: #{tpu_custom_call.1} parent=5 // pred_check_branch
        %1414 = sbr.rel (%p1412) target = $region145
      $region144: #{tpu_custom_call.1} parent=5 // pred_region
        %s1415 = ssub.s32 %s27, 2
        // Predicated region
        $region146: #{tpu_custom_call.1} parent=144 // pred_check
          %p1416 = pneg %p439
        $region147: #{tpu_custom_call.1} parent=144 // pred_check_branch
          %1418 = sbr.rel (%p1416) target = $region149
        $region148: #{tpu_custom_call.1} parent=144 // pred_region
          %s1419 = sand.u32 %s424, 1
          %s1420 = scalar_lea.sflag [#allocation7], %s1419
          %s1421 = sand.u32 %s424, 1
          %s1422 = smul.addr %s1421, 32
          %s1423 = scalar_lea.vmem [#allocation8], %s1422
          %1424 = dma.done %s1420, 512
        $region149: #{tpu_custom_call.1} parent=144 // pred_fallthru
          _
      $region145: #{tpu_custom_call.1} parent=5 // pred_fallthru
        _
    $region6: #{tpu_custom_call.1} parent=1 // loop_footer
      %s31 = sadd.s32 1, %s27
    $region7: #{tpu_custom_call.1} parent=1 // loop_footer_branch
      %26 = sbr.rel target = $region3
    $region8: #{tpu_custom_call.1} parent=1 // loop_exit
      _
    %1425 = vsyncpa [#allocation6], 1
    %s1426 = scalar_lea.sflag [#allocation6], 1
    %1427 = vsyncpa %s1426, 1
    %1428 = vsyncpa [#allocation7], 1
    %s1429 = scalar_lea.sflag [#allocation7], 1
    %1430 = vsyncpa %s1429, 1

</llo_original>
